<compile_context>
chip_gen: v6e
topology: v6e:2x2x1
jax: 0.10.0
libtpu: 0.0.40
codegen_flags: <defaults>
</compile_context>

<pallas_src>
import jax
import jax.numpy as jnp
from jax.experimental import pallas as pl
from jax.experimental.pallas import tpu as pltpu

BN_EPS = 1e-5
LANE = 128


# -----------------------------------------------------------------------------
# Kernel
# -----------------------------------------------------------------------------
def _mlp_kernel(x_ref, w1_ref, b1_ref, w2_ref, b2_ref, w3_ref, b3_ref,
                a_ref, o_ref):
    # fc1 (+ folded bn1) + PReLU   -- bf16 MXU matmul, f32 accumulate/epilogue
    h = jnp.dot(x_ref[...], w1_ref[...], preferred_element_type=jnp.float32)
    h = h + b1_ref[...]
    h = jnp.where(h >= 0.0, h, a_ref[0] * h)
    # drop1: identity (eval mode)

    # fc2 (+ folded bn2) + PReLU
    h = jnp.dot(h.astype(jnp.bfloat16), w2_ref[...],
                preferred_element_type=jnp.float32)
    h = h + b2_ref[...]
    h = jnp.where(h >= 0.0, h, a_ref[1] * h)
    # drop2: identity (eval mode)

    # fc3 (padded to 128 lanes) + sigmoid
    logits = jnp.dot(h.astype(jnp.bfloat16), w3_ref[...],
                     preferred_element_type=jnp.float32)
    logits = logits + b3_ref[...]
    o_ref[...] = jax.nn.sigmoid(logits)


# -----------------------------------------------------------------------------
# Parameter prep: fold BN, cast weights to bf16, pad fc3 to 128 lanes
# -----------------------------------------------------------------------------
def prepare_params(params):
    s1 = params["g1"] * jax.lax.rsqrt(params["v1"] + BN_EPS)     # (1, 1024)
    w1 = (params["w1"] * s1).astype(jnp.bfloat16)
    b1 = (params["b1"] - params["m1"]) * s1 + params["be1"]      # f32

    s2 = params["g2"] * jax.lax.rsqrt(params["v2"] + BN_EPS)     # (1, 512)
    w2 = (params["w2"] * s2).astype(jnp.bfloat16)
    b2 = (params["b2"] - params["m2"]) * s2 + params["be2"]      # f32

    nc = params["w3"].shape[1]
    nc_pad = max(LANE, -(-nc // LANE) * LANE)
    w3 = jnp.pad(params["w3"], ((0, 0), (0, nc_pad - nc))).astype(jnp.bfloat16)
    b3 = jnp.pad(params["b3"], ((0, 0), (0, nc_pad - nc)))       # f32

    alphas = jnp.concatenate(
        [params["a1"].reshape(-1), params["a2"].reshape(-1)])     # (2,) f32

    return {"w1": w1, "b1": b1, "w2": w2, "b2": b2, "w3": w3, "b3": b3,
            "alphas": alphas, "num_classes": nc, "num_classes_pad": nc_pad}


# -----------------------------------------------------------------------------
# Wrapper
# -----------------------------------------------------------------------------
def baseline_model1_forward(x, kp):
    """x: (B, inputsize) f32/bf16.  kp: output of prepare_params()."""
    B, inputsize = x.shape
    nc = kp["num_classes"]
    nc_pad = kp["num_classes_pad"]
    H1 = kp["w1"].shape[1]
    H2 = kp["w2"].shape[1]

    # Batch tiling: TB rows per grid step (sublane-aligned), pad B if needed.
    if B >= 256:
        TB = 256
    else:
        TB = max(8, -(-B // 8) * 8)
    B_pad = -(-B // TB) * TB
    if B_pad != B:
        x = jnp.pad(x, ((0, B_pad - B), (0, 0)))
    xb = x.astype(jnp.bfloat16)

    grid = (B_pad // TB,)

    vmem = pltpu.MemorySpace.VMEM
    in_specs = [
        pl.BlockSpec((TB, inputsize), lambda i: (i, 0), memory_space=vmem),   # x tile
        pl.BlockSpec((inputsize, H1), lambda i: (0, 0), memory_space=vmem),   # w1
        pl.BlockSpec((1, H1), lambda i: (0, 0), memory_space=vmem),           # b1
        pl.BlockSpec((H1, H2), lambda i: (0, 0), memory_space=vmem),          # w2
        pl.BlockSpec((1, H2), lambda i: (0, 0), memory_space=vmem),           # b2
        pl.BlockSpec((H2, nc_pad), lambda i: (0, 0), memory_space=vmem),      # w3
        pl.BlockSpec((1, nc_pad), lambda i: (0, 0), memory_space=vmem),       # b3
        pl.BlockSpec(memory_space=pltpu.MemorySpace.SMEM),                    # alphas
    ]
    out_specs = pl.BlockSpec((TB, nc_pad), lambda i: (i, 0), memory_space=vmem)

    # VMEM budget: resident weights + double-buffered x/out tiles + headroom.
    weight_bytes = sum(int(a.size) * a.dtype.itemsize
                       for a in (kp["w1"], kp["b1"], kp["w2"], kp["b2"],
                                 kp["w3"], kp["b3"]))
    act_bytes = 2 * (TB * inputsize * 2 + TB * nc_pad * 4) \
        + TB * (H1 + H2) * 6
    vmem_limit = min(max(weight_bytes + act_bytes + (4 << 20), 16 << 20),
                     48 << 20)

    cost = pl.CostEstimate(
        flops=2 * B_pad * (inputsize * H1 + H1 * H2 + H2 * nc_pad),
        transcendentals=B_pad * nc_pad,
        bytes_accessed=weight_bytes + B_pad * inputsize * 2 + B_pad * nc_pad * 4,
    )

    out = pl.pallas_call(
        _mlp_kernel,
        out_shape=jax.ShapeDtypeStruct((B_pad, nc_pad), jnp.float32),
        grid=grid,
        in_specs=in_specs,
        out_specs=out_specs,
        compiler_params=pltpu.CompilerParams(
            dimension_semantics=("parallel",),
            vmem_limit_bytes=vmem_limit,
        ),
        cost_estimate=cost,
    )(xb, kp["w1"], kp["b1"], kp["w2"], kp["b2"], kp["w3"], kp["b3"],
      kp["alphas"])

    return out[:B, :nc]


# -----------------------------------------------------------------------------
# Parameter init matching the PyTorch module's shapes / eval-mode state
# -----------------------------------------------------------------------------
def init_params(key, inputsize, num_classes):
    """Linear weights stored as (in, out) (transposed vs. PyTorch's (out, in)).
    BN: gamma=1, beta=0, running_mean=0, running_var=1.  PReLU slope = 0.25."""
    k1, k2, k3, kb1, kb2, kb3 = jax.random.split(key, 6)

    def linear(kw, kb, fan_in, fan_out):
        bound = 1.0 / jnp.sqrt(jnp.float32(fan_in))
        w = jax.random.uniform(kw, (fan_in, fan_out), jnp.float32, -bound, bound)
        b = jax.random.uniform(kb, (1, fan_out), jnp.float32, -bound, bound)
        return w, b

    w1, b1 = linear(k1, kb1, inputsize, 1024)
    w2, b2 = linear(k2, kb2, 1024, 512)
    w3, b3 = linear(k3, kb3, 512, num_classes)

    return {
        "w1": w1, "b1": b1,
        "g1": jnp.ones((1, 1024), jnp.float32),
        "be1": jnp.zeros((1, 1024), jnp.float32),
        "m1": jnp.zeros((1, 1024), jnp.float32),
        "v1": jnp.ones((1, 1024), jnp.float32),
        "a1": jnp.full((1, 1), 0.25, jnp.float32),
        "w2": w2, "b2": b2,
        "g2": jnp.ones((1, 512), jnp.float32),
        "be2": jnp.zeros((1, 512), jnp.float32),
        "m2": jnp.zeros((1, 512), jnp.float32),
        "v2": jnp.ones((1, 512), jnp.float32),
        "a2": jnp.full((1, 1), 0.25, jnp.float32),
        "w3": w3, "b3": b3,
    }


# -----------------------------------------------------------------------------
# References
# -----------------------------------------------------------------------------
def _reference_kernel_math(x, kp):
    """Plain-JAX replica of the kernel math (folded BN, bf16 matmuls)."""
    xb = x.astype(jnp.bfloat16)
    h = jnp.dot(xb, kp["w1"], preferred_element_type=jnp.float32) + kp["b1"]
    h = jnp.where(h >= 0.0, h, kp["alphas"][0] * h)
    h = jnp.dot(h.astype(jnp.bfloat16), kp["w2"],
                preferred_element_type=jnp.float32) + kp["b2"]
    h = jnp.where(h >= 0.0, h, kp["alphas"][1] * h)
    logits = jnp.dot(h.astype(jnp.bfloat16), kp["w3"],
                     preferred_element_type=jnp.float32) + kp["b3"]
    return jax.nn.sigmoid(logits)[:, :kp["num_classes"]]


def _reference_f32(x, p):
    """Full-precision eval-mode reference of the original module."""
    def bn(h, g, be, m, v):
        return (h - m) / jnp.sqrt(v + BN_EPS) * g + be

    def prelu(h, a):
        return jnp.where(h >= 0.0, h, a[0, 0] * h)

    h = x @ p["w1"] + p["b1"]
    h = prelu(bn(h, p["g1"], p["be1"], p["m1"], p["v1"]), p["a1"])
    h = h @ p["w2"] + p["b2"]
    h = prelu(bn(h, p["g2"], p["be2"], p["m2"], p["v2"]), p["a2"])
    return jax.nn.sigmoid(h @ p["w3"] + p["b3"])


if __name__ == "__main__":
    key = jax.random.PRNGKey(0)
    kx, kparam = jax.random.split(key)

    batch = 8
    inputsize = 32
    num_classes = 4

    x = jax.random.normal(kx, (batch, inputsize), jnp.float32)
    params = init_params(kparam, inputsize, num_classes)
    kp = prepare_params(params)

    out = baseline_model1_forward(x, kp)
    out = jax.block_until_ready(out)
    assert out.shape == (batch, num_classes)

    # Strict check against a reference that mirrors the kernel math exactly.
    ref_bf16 = _reference_kernel_math(x, kp)
    assert jnp.allclose(out, ref_bf16, atol=1e-4, rtol=1e-4), \
        "mismatch vs kernel-math reference"

    # Looser sanity check against the full-f32 eval-mode module semantics
    # (differences come only from bf16 matmul quantization).
    ref_f32 = _reference_f32(x, params)
    assert jnp.allclose(out, ref_f32, atol=3e-2), "mismatch vs f32 reference"

    print("KERNEL_OK")
</pallas_src>

<mosaic_0001>
module attributes {stable_mosaic.version = 11 : i64} {
  func.func @_mlp_kernel(%arg0: i32, %arg1: memref<8x32xbf16, #tpu.memory_space<vmem>>, %arg2: memref<32x1024xbf16, #tpu.memory_space<vmem>>, %arg3: memref<1x1024xf32, #tpu.memory_space<vmem>>, %arg4: memref<1024x512xbf16, #tpu.memory_space<vmem>>, %arg5: memref<1x512xf32, #tpu.memory_space<vmem>>, %arg6: memref<512x128xbf16, #tpu.memory_space<vmem>>, %arg7: memref<1x128xf32, #tpu.memory_space<vmem>>, %arg8: memref<2xf32, #tpu.memory_space<smem>>, %arg9: memref<8x128xf32, #tpu.memory_space<vmem>>) attributes {dimension_semantics = [#tpu.dimension_semantics<parallel>], iteration_bounds = array<i64: 1>, scalar_prefetch = 0 : i64, scratch_operands = 0 : i64, tpu.core_type = #tpu.core_type<tc>, window_params = [{transform_indices = @transform_0, window_bounds = array<i64: 8, 32>}, {pipeline_mode = #tpu.pipeline_mode<synchronous>, transform_indices = @transform_1, window_bounds = array<i64: 32, 1024>}, {pipeline_mode = #tpu.pipeline_mode<synchronous>, transform_indices = @transform_2, window_bounds = array<i64: 1, 1024>}, {pipeline_mode = #tpu.pipeline_mode<synchronous>, transform_indices = @transform_3, window_bounds = array<i64: 1024, 512>}, {pipeline_mode = #tpu.pipeline_mode<synchronous>, transform_indices = @transform_4, window_bounds = array<i64: 1, 512>}, {pipeline_mode = #tpu.pipeline_mode<synchronous>, transform_indices = @transform_5, window_bounds = array<i64: 512, 128>}, {pipeline_mode = #tpu.pipeline_mode<synchronous>, transform_indices = @transform_6, window_bounds = array<i64: 1, 128>}, {transform_indices = @transform_7, window_bounds = array<i64: 2>}, {transform_indices = @transform_8, window_bounds = array<i64: 8, 128>}]} {
    %c0 = arith.constant 0 : index
    %c0_0 = arith.constant 0 : index
    %0 = vector.load %arg1[%c0, %c0_0] : memref<8x32xbf16, #tpu.memory_space<vmem>>, vector<8x32xbf16>
    %c0_1 = arith.constant 0 : index
    %c0_2 = arith.constant 0 : index
    %1 = vector.load %arg2[%c0_1, %c0_2] : memref<32x1024xbf16, #tpu.memory_space<vmem>>, vector<32x1024xbf16>
    %cst = arith.constant dense<0.000000e+00> : vector<8x1024xf32>
    %2 = tpu.matmul %0, %1, %cst {dimension_numbers = #tpu.dot_dimension_numbers<[1], [0], [0], [1], [0, 0, 1, 1], [], []>} : vector<8x32xbf16>, vector<32x1024xbf16>, vector<8x1024xf32> -> vector<8x1024xf32>
    %c0_3 = arith.constant 0 : index
    %c0_4 = arith.constant 0 : index
    %3 = vector.load %arg3[%c0_3, %c0_4] : memref<1x1024xf32, #tpu.memory_space<vmem>>, vector<1x1024xf32>
    %4 = vector.broadcast %3 : vector<1x1024xf32> to vector<8x1024xf32>
    %5 = arith.addf %2, %4 : vector<8x1024xf32>
    %cst_5 = arith.constant 0.000000e+00 : f32
    %6 = vector.broadcast %cst_5 : f32 to vector<8x1024xf32>
    %7 = arith.cmpf oge, %5, %6 : vector<8x1024xf32>
    %c0_6 = arith.constant 0 : index
    %8 = memref.load %arg8[%c0_6] : memref<2xf32, #tpu.memory_space<smem>>
    %9 = vector.broadcast %8 : f32 to vector<8x1024xf32>
    %10 = arith.mulf %9, %5 : vector<8x1024xf32>
    %11 = arith.select %7, %5, %10 : vector<8x1024xi1>, vector<8x1024xf32>
    %12 = arith.truncf %11 : vector<8x1024xf32> to vector<8x1024xbf16>
    %c0_7 = arith.constant 0 : index
    %c0_8 = arith.constant 0 : index
    %13 = vector.load %arg4[%c0_7, %c0_8] : memref<1024x512xbf16, #tpu.memory_space<vmem>>, vector<1024x512xbf16>
    %cst_9 = arith.constant dense<0.000000e+00> : vector<8x512xf32>
    %14 = tpu.matmul %12, %13, %cst_9 {dimension_numbers = #tpu.dot_dimension_numbers<[1], [0], [0], [1], [0, 0, 1, 1], [], []>} : vector<8x1024xbf16>, vector<1024x512xbf16>, vector<8x512xf32> -> vector<8x512xf32>
    %c0_10 = arith.constant 0 : index
    %c0_11 = arith.constant 0 : index
    %15 = vector.load %arg5[%c0_10, %c0_11] : memref<1x512xf32, #tpu.memory_space<vmem>>, vector<1x512xf32>
    %16 = vector.broadcast %15 : vector<1x512xf32> to vector<8x512xf32>
    %17 = arith.addf %14, %16 : vector<8x512xf32>
    %cst_12 = arith.constant 0.000000e+00 : f32
    %18 = vector.broadcast %cst_12 : f32 to vector<8x512xf32>
    %19 = arith.cmpf oge, %17, %18 : vector<8x512xf32>
    %c1 = arith.constant 1 : index
    %20 = memref.load %arg8[%c1] : memref<2xf32, #tpu.memory_space<smem>>
    %21 = vector.broadcast %20 : f32 to vector<8x512xf32>
    %22 = arith.mulf %21, %17 : vector<8x512xf32>
    %23 = arith.select %19, %17, %22 : vector<8x512xi1>, vector<8x512xf32>
    %24 = arith.truncf %23 : vector<8x512xf32> to vector<8x512xbf16>
    %c0_13 = arith.constant 0 : index
    %c0_14 = arith.constant 0 : index
    %25 = vector.load %arg6[%c0_13, %c0_14] : memref<512x128xbf16, #tpu.memory_space<vmem>>, vector<512x128xbf16>
    %cst_15 = arith.constant dense<0.000000e+00> : vector<8x128xf32>
    %26 = tpu.matmul %24, %25, %cst_15 {dimension_numbers = #tpu.dot_dimension_numbers<[1], [0], [0], [1], [0, 0, 1, 1], [], []>} : vector<8x512xbf16>, vector<512x128xbf16>, vector<8x128xf32> -> vector<8x128xf32>
    %c0_16 = arith.constant 0 : index
    %c0_17 = arith.constant 0 : index
    %27 = vector.load %arg7[%c0_16, %c0_17] : memref<1x128xf32, #tpu.memory_space<vmem>>, vector<1x128xf32>
    %28 = vector.broadcast %27 : vector<1x128xf32> to vector<8x128xf32>
    %29 = arith.addf %26, %28 : vector<8x128xf32>
    %30 = arith.negf %29 : vector<8x128xf32>
    %31 = math.exp %30 : vector<8x128xf32>
    %cst_18 = arith.constant 1.000000e+00 : f32
    %32 = vector.broadcast %cst_18 : f32 to vector<8x128xf32>
    %33 = arith.addf %32, %31 : vector<8x128xf32>
    %34 = arith.divf %32, %33 : vector<8x128xf32>
    %c0_19 = arith.constant 0 : index
    %c0_20 = arith.constant 0 : index
    %35 = vector.load %arg9[%c0_19, %c0_20] : memref<8x128xf32, #tpu.memory_space<vmem>>, vector<8x128xf32>
    tpu.vector_store %arg9[%c0_19, %c0_20], %34 {strides = array<i32>} : memref<8x128xf32, #tpu.memory_space<vmem>>, vector<8x128xf32>,
    return
  }
  func.func @transform_0(%arg0: i32) -> (i32, i32) {
    %c0_i32 = arith.constant 0 : i32
    %c0_i32_0 = arith.constant 0 : i32
    return %arg0, %c0_i32 : i32, i32
  }
  func.func @transform_1(%arg0: i32) -> (i32, i32) {
    %c0_i32 = arith.constant 0 : i32
    %c0_i32_0 = arith.constant 0 : i32
    %c0_i32_1 = arith.constant 0 : i32
    return %c0_i32, %c0_i32_0 : i32, i32
  }
  func.func @transform_2(%arg0: i32) -> (i32, i32) {
    %c0_i32 = arith.constant 0 : i32
    %c0_i32_0 = arith.constant 0 : i32
    %c0_i32_1 = arith.constant 0 : i32
    return %c0_i32, %c0_i32_0 : i32, i32
  }
  func.func @transform_3(%arg0: i32) -> (i32, i32) {
    %c0_i32 = arith.constant 0 : i32
    %c0_i32_0 = arith.constant 0 : i32
    %c0_i32_1 = arith.constant 0 : i32
    return %c0_i32, %c0_i32_0 : i32, i32
  }
  func.func @transform_4(%arg0: i32) -> (i32, i32) {
    %c0_i32 = arith.constant 0 : i32
    %c0_i32_0 = arith.constant 0 : i32
    %c0_i32_1 = arith.constant 0 : i32
    return %c0_i32, %c0_i32_0 : i32, i32
  }
  func.func @transform_5(%arg0: i32) -> (i32, i32) {
    %c0_i32 = arith.constant 0 : i32
    %c0_i32_0 = arith.constant 0 : i32
    %c0_i32_1 = arith.constant 0 : i32
    return %c0_i32, %c0_i32_0 : i32, i32
  }
  func.func @transform_6(%arg0: i32) -> (i32, i32) {
    %c0_i32 = arith.constant 0 : i32
    %c0_i32_0 = arith.constant 0 : i32
    %c0_i32_1 = arith.constant 0 : i32
    return %c0_i32, %c0_i32_0 : i32, i32
  }
  func.func @transform_7(%arg0: i32) -> i32 {
    %c0_i32 = arith.constant 0 : i32
    %c0_i32_0 = arith.constant 0 : i32
    return %c0_i32 : i32
  }
  func.func @transform_8(%arg0: i32) -> (i32, i32) {
    %c0_i32 = arith.constant 0 : i32
    %c0_i32_0 = arith.constant 0 : i32
    return %arg0, %c0_i32 : i32, i32
  }
}

</mosaic_0001>

<llo_original>
// kernel: tpu_custom_call.1
$region0: #{tpu_custom_call.1}
  #allocation0 [shape = 'u32[]', space=smem, size = 0x4, offset = 0x4, fixed_abs, tag = 'smem constant byte address 0x4 - core index']
  #allocation1 [shape = 'u32[144,128]{1,0:T(1,128)}', space=vmem, size = 0x12000, scoped, tag = 'internal scratch']
  %s0 = inlined_call_operand.hbm [shape: bf16[8,32], index: 0, kind: input, shape index: {}]
  %s1 = inlined_call_operand.hbm [shape: bf16[32,1024], index: 1, kind: input, shape index: {}]
  %s2 = inlined_call_operand.hbm [shape: f32[1,1024], index: 2, kind: input, shape index: {}]
  %s3 = inlined_call_operand.hbm [shape: bf16[1024,512], index: 3, kind: input, shape index: {}]
  %s4 = inlined_call_operand.vmem [shape: f32[1,512], index: 4, kind: input, shape index: {}]
  %s5 = inlined_call_operand.hbm [shape: bf16[512,128], index: 5, kind: input, shape index: {}]
  %s6 = inlined_call_operand.vmem [shape: f32[1,128], index: 6, kind: input, shape index: {}]
  %s7 = inlined_call_operand.vmem [shape: f32[2], index: 7, kind: input, shape index: {}]
  %s8 = inlined_call_operand.hbm [shape: f32[8,128], index: 8, kind: output, shape index: {}]
  %s9 = sld [smem:[#allocation0]]
  $region66: #{tpu_custom_call.1} parent=0
    _
  %s11 = ssub.s32 1, %s9
  %s12 = scalar_select 0, %s11, %s9
  $region1: #{tpu_custom_call.1} parent=0
    #allocation2 [shape = 'u8[2048]{0}', space=vmem, size = 0x800, scoped, tag = 'input window, operand 0, single buffered']
    #allocation3 [shape = 's32[1]{0}', space=sflag, size = 0x4, scoped, tag = 'scoped memory for tpu_custom_call.1']
    #allocation4 [shape = 's32[1]{0}', space=sflag, size = 0x4, scoped, tag = 'scoped memory for tpu_custom_call.1']
    #allocation5 [shape = 's32[1]{0}', space=sflag, size = 0x4, scoped, tag = 'scoped memory for tpu_custom_call.1']
    #allocation6 [shape = 'u8[65536]{0}', space=vmem, size = 0x10000, scoped, tag = 'input window, operand 1, single buffered']
    #allocation7 [shape = 's32[1]{0}', space=sflag, size = 0x4, scoped, tag = 'scoped memory for tpu_custom_call.1']
    #allocation8 [shape = 'u8[4096]{0}', space=vmem, size = 0x1000, scoped, tag = 'input window, operand 2, single buffered']
    #allocation9 [shape = 'u8[1048576]{0}', space=vmem, size = 0x100000, scoped, tag = 'input window, operand 3, single buffered']
    #allocation10 [shape = 's32[1]{0}', space=sflag, size = 0x4, scoped, tag = 'scoped memory for tpu_custom_call.1']
    #allocation11 [shape = 'u8[131072]{0}', space=vmem, size = 0x20000, scoped, tag = 'input window, operand 5, single buffered']
    #allocation12 [shape = 'u8[512]{0}', space=smem, size = 0x200, scoped, tag = 'input window, operand 7, single buffered']
    #allocation13 [shape = 'u8[4096]{0}', space=vmem, size = 0x1000, scoped, tag = 'output window, operand 0, single buffered']
    %13 = vsyncpa [#allocation3], 0
    %14 = vsyncpa [#allocation7], 0
    %15 = vsyncpa [#allocation10], 0
    %16 = vsyncpa [#allocation5], 0
    %17 = vsyncpa [#allocation4], 0
    // Predicated region
    $region2: #{tpu_custom_call.1} parent=1 // pred_check
      _
    $region3: #{tpu_custom_call.1} parent=1 // pred_check_branch
      %19 = sbr.rel (0) target = $region5
    $region4: #{tpu_custom_call.1} parent=1 // pred_region
      %s21 = ssub.s32 64, 64
      %22 = vsyncadd [#allocation3], %s21
      %s24 = sshll.u32 [#allocation2], 4
      %s25 = int_to_ptr.vmem [resolvable:$true] %s24
      %27 = dma.hbm_to_vmem [thread:$0]  %s0, 64, %s25, [#allocation3]
    $region5: #{tpu_custom_call.1} parent=1 // pred_fallthru
      _
    // Predicated region
    $region6: #{tpu_custom_call.1} parent=1 // pred_check
      _
    $region7: #{tpu_custom_call.1} parent=1 // pred_check_branch
      %29 = sbr.rel (0) target = $region9
    $region8: #{tpu_custom_call.1} parent=1 // pred_region
      %s31 = ssub.s32 2048, 2048
      %32 = vsyncadd [#allocation7], %s31
      %s33 = sshll.u32 [#allocation6], 4
      %s34 = int_to_ptr.vmem [resolvable:$true] %s33
      %39 = dma.hbm_to_vmem [thread:$0]  %s1, 2048, %s34, [#allocation7], 512, 512, 32
    $region9: #{tpu_custom_call.1} parent=1 // pred_fallthru
      _
    // Predicated region
    $region10: #{tpu_custom_call.1} parent=1 // pred_check
      _
    $region11: #{tpu_custom_call.1} parent=1 // pred_check_branch
      %41 = sbr.rel (0) target = $region13
    $region12: #{tpu_custom_call.1} parent=1 // pred_region
      %s43 = ssub.s32 128, 128
      %44 = vsyncadd [#allocation7], %s43
      %s46 = sshll.u32 [#allocation8], 4
      %s47 = int_to_ptr.vmem [resolvable:$true] %s46
      %49 = dma.hbm_to_vmem [thread:$0]  %s2, 128, %s47, [#allocation7]
    $region13: #{tpu_custom_call.1} parent=1 // pred_fallthru
      _
    // Predicated region
    $region14: #{tpu_custom_call.1} parent=1 // pred_check
      _
    $region15: #{tpu_custom_call.1} parent=1 // pred_check_branch
      %51 = sbr.rel (0) target = $region17
    $region16: #{tpu_custom_call.1} parent=1 // pred_region
      %s53 = ssub.s32 32768, 32768
      %54 = vsyncadd [#allocation10], %s53
      %s55 = sshll.u32 [#allocation9], 4
      %s56 = int_to_ptr.vmem [resolvable:$true] %s55
      %61 = dma.hbm_to_vmem [thread:$0]  %s3, 32768, %s56, [#allocation10], 256, 256, 16
    $region17: #{tpu_custom_call.1} parent=1 // pred_fallthru
      _
    // Predicated region
    $region18: #{tpu_custom_call.1} parent=1 // pred_check
      _
    $region19: #{tpu_custom_call.1} parent=1 // pred_check_branch
      %63 = sbr.rel (0) target = $region21
    $region20: #{tpu_custom_call.1} parent=1 // pred_region
      _
    $region21: #{tpu_custom_call.1} parent=1 // pred_fallthru
      _
    // Predicated region
    $region22: #{tpu_custom_call.1} parent=1 // pred_check
      _
    $region23: #{tpu_custom_call.1} parent=1 // pred_check_branch
      %65 = sbr.rel (0) target = $region25
    $region24: #{tpu_custom_call.1} parent=1 // pred_region
      %s67 = ssub.s32 4096, 4096
      %68 = vsyncadd [#allocation10], %s67
      %s69 = sshll.u32 [#allocation11], 4
      %s70 = int_to_ptr.vmem [resolvable:$true] %s69
      %75 = dma.hbm_to_vmem [thread:$0]  %s5, 4096, %s70, [#allocation10], 64, 64, 4
    $region25: #{tpu_custom_call.1} parent=1 // pred_fallthru
      _
    // Predicated region
    $region26: #{tpu_custom_call.1} parent=1 // pred_check
      _
    $region27: #{tpu_custom_call.1} parent=1 // pred_check_branch
      %77 = sbr.rel (0) target = $region29
    $region28: #{tpu_custom_call.1} parent=1 // pred_region
      _
    $region29: #{tpu_custom_call.1} parent=1 // pred_fallthru
      _
    // Predicated region
    $region30: #{tpu_custom_call.1} parent=1 // pred_check
      _
    $region31: #{tpu_custom_call.1} parent=1 // pred_check_branch
      %79 = sbr.rel (0) target = $region33
    $region32: #{tpu_custom_call.1} parent=1 // pred_region
      %s81 = ssub.s32 16, 16
      %82 = vsyncadd [#allocation5], %s81
      %s84 = sshll.u32 %s7, 4
      %s85 = int_to_ptr.vmem [resolvable:$true] %s84
      %87 = dma.vmem_to_smem %s85, 16, [#allocation12], [#allocation5]
    $region33: #{tpu_custom_call.1} parent=1 // pred_fallthru
      _
    // Predicated region
    $region34: #{tpu_custom_call.1} parent=1 // pred_check
      _
    $region35: #{tpu_custom_call.1} parent=1 // pred_check_branch
      %89 = sbr.rel (0) target = $region37
    $region36: #{tpu_custom_call.1} parent=1 // pred_region
      %90 = dma.done [#allocation3], 64
    $region37: #{tpu_custom_call.1} parent=1 // pred_fallthru
      _
    // Predicated region
    $region38: #{tpu_custom_call.1} parent=1 // pred_check
      _
    $region39: #{tpu_custom_call.1} parent=1 // pred_check_branch
      %92 = sbr.rel (0) target = $region41
    $region40: #{tpu_custom_call.1} parent=1 // pred_region
      %93 = dma.done [#allocation7], 2048
    $region41: #{tpu_custom_call.1} parent=1 // pred_fallthru
      _
    // Predicated region
    $region42: #{tpu_custom_call.1} parent=1 // pred_check
      _
    $region43: #{tpu_custom_call.1} parent=1 // pred_check_branch
      %95 = sbr.rel (0) target = $region45
    $region44: #{tpu_custom_call.1} parent=1 // pred_region
      %96 = dma.done [#allocation7], 128
    $region45: #{tpu_custom_call.1} parent=1 // pred_fallthru
      _
    // Predicated region
    $region46: #{tpu_custom_call.1} parent=1 // pred_check
      _
    $region47: #{tpu_custom_call.1} parent=1 // pred_check_branch
      %98 = sbr.rel (0) target = $region49
    $region48: #{tpu_custom_call.1} parent=1 // pred_region
      %99 = dma.done [#allocation10], 32768
    $region49: #{tpu_custom_call.1} parent=1 // pred_fallthru
      _
    // Predicated region
    $region50: #{tpu_custom_call.1} parent=1 // pred_check
      _
    $region51: #{tpu_custom_call.1} parent=1 // pred_check_branch
      %101 = sbr.rel (0) target = $region53
    $region52: #{tpu_custom_call.1} parent=1 // pred_region
      %102 = dma.done [#allocation10], 4096
    $region53: #{tpu_custom_call.1} parent=1 // pred_fallthru
      _
    // Predicated region
    $region54: #{tpu_custom_call.1} parent=1 // pred_check
      _
    $region55: #{tpu_custom_call.1} parent=1 // pred_check_branch
      %104 = sbr.rel (0) target = $region57
    $region56: #{tpu_custom_call.1} parent=1 // pred_region
      %105 = dma.done [#allocation5], 16
    $region57: #{tpu_custom_call.1} parent=1 // pred_fallthru
      _
    %106 = sfence
    %v108 = vld [vmem:[#allocation2] sm:$0xf]
    %v109 = vld [vmem:[#allocation6] sm:$0xff]
    %v110 = vld [vmem:[#allocation6 + $0x8] sm:$0xff]
    %v111 = vld [vmem:[#allocation6 + $0x10] sm:$0xff]
    %v112 = vld [vmem:[#allocation6 + $0x18] sm:$0xff]
    %v113 = vld [vmem:[#allocation6 + $0x20] sm:$0xff]
    %v114 = vld [vmem:[#allocation6 + $0x28] sm:$0xff]
    %v115 = vld [vmem:[#allocation6 + $0x30] sm:$0xff]
    %v116 = vld [vmem:[#allocation6 + $0x38] sm:$0xff]
    %v117 = vld [vmem:[#allocation6 + $0x40] sm:$0xff]
    %v118 = vld [vmem:[#allocation6 + $0x48] sm:$0xff]
    %v119 = vld [vmem:[#allocation6 + $0x50] sm:$0xff]
    %v120 = vld [vmem:[#allocation6 + $0x58] sm:$0xff]
    %v121 = vld [vmem:[#allocation6 + $0x60] sm:$0xff]
    %v122 = vld [vmem:[#allocation6 + $0x68] sm:$0xff]
    %v123 = vld [vmem:[#allocation6 + $0x70] sm:$0xff]
    %v124 = vld [vmem:[#allocation6 + $0x78] sm:$0xff]
    %v125 = vld [vmem:[#allocation8] sm:$0xff]
    %v127 = vlaneseq
    %v128 = vshrl.u32 %v127, 7
    %v129 = vsub.s32 0, %v128
    %v130 = vrot.slane %v125, %v129
    %v131 = vlaneseq
    %v132 = vshrl.u32 %v131, 7
    %v133 = vsub.s32 1, %v132
    %v134 = vrot.slane %v125, %v133
    %v135 = vlaneseq
    %v136 = vshrl.u32 %v135, 7
    %v137 = vsub.s32 2, %v136
    %v138 = vrot.slane %v125, %v137
    %v139 = vlaneseq
    %v140 = vshrl.u32 %v139, 7
    %v141 = vsub.s32 3, %v140
    %v142 = vrot.slane %v125, %v141
    %v143 = vlaneseq
    %v144 = vshrl.u32 %v143, 7
    %v145 = vsub.s32 4, %v144
    %v146 = vrot.slane %v125, %v145
    %v147 = vlaneseq
    %v148 = vshrl.u32 %v147, 7
    %v149 = vsub.s32 5, %v148
    %v150 = vrot.slane %v125, %v149
    %v151 = vlaneseq
    %v152 = vshrl.u32 %v151, 7
    %v153 = vsub.s32 6, %v152
    %v154 = vrot.slane %v125, %v153
    %v155 = vlaneseq
    %v156 = vshrl.u32 %v155, 7
    %v157 = vsub.s32 7, %v156
    %v158 = vrot.slane %v125, %v157
    %v183 = vunpack.c.l.b16 %v109
    %v184 = vunpack.c.h.b16 %v109
    %v185 = vunpack.c.l.b16 %v110
    %v186 = vunpack.c.h.b16 %v110
    %v187 = vunpack.c.l.b16 %v111
    %v188 = vunpack.c.h.b16 %v111
    %v189 = vunpack.c.l.b16 %v112
    %v190 = vunpack.c.h.b16 %v112
    %v191 = vunpack.c.l.b16 %v113
    %v192 = vunpack.c.h.b16 %v113
    %v193 = vunpack.c.l.b16 %v114
    %v194 = vunpack.c.h.b16 %v114
    %v195 = vunpack.c.l.b16 %v115
    %v196 = vunpack.c.h.b16 %v115
    %v197 = vunpack.c.l.b16 %v116
    %v198 = vunpack.c.h.b16 %v116
    %v199 = vunpack.c.l.b16 %v117
    %v200 = vunpack.c.h.b16 %v117
    %v201 = vunpack.c.l.b16 %v118
    %v202 = vunpack.c.h.b16 %v118
    %v203 = vunpack.c.l.b16 %v119
    %v204 = vunpack.c.h.b16 %v119
    %v205 = vunpack.c.l.b16 %v120
    %v206 = vunpack.c.h.b16 %v120
    %v207 = vunpack.c.l.b16 %v121
    %v208 = vunpack.c.h.b16 %v121
    %v209 = vunpack.c.l.b16 %v122
    %v210 = vunpack.c.h.b16 %v122
    %v211 = vunpack.c.l.b16 %v123
    %v212 = vunpack.c.h.b16 %v123
    %v213 = vunpack.c.l.b16 %v124
    %v214 = vunpack.c.h.b16 %v124
    %v215 = vpack.c.b16 %v191, %v183
    %v216 = vpack.c.b16 %v192, %v184
    %v217 = vpack.c.b16 %v193, %v185
    %v218 = vpack.c.b16 %v194, %v186
    %v219 = vpack.c.b16 %v195, %v187
    %v220 = vpack.c.b16 %v196, %v188
    %v221 = vpack.c.b16 %v197, %v189
    %v222 = vpack.c.b16 %v198, %v190
    %v223 = vpack.c.b16 %v207, %v199
    %v224 = vpack.c.b16 %v208, %v200
    %v225 = vpack.c.b16 %v209, %v201
    %v226 = vpack.c.b16 %v210, %v202
    %v227 = vpack.c.b16 %v211, %v203
    %v228 = vpack.c.b16 %v212, %v204
    %v229 = vpack.c.b16 %v213, %v205
    %v230 = vpack.c.b16 %v214, %v206
    %vm247 = vcmask 261120
    %v249 = vsel %vm247, %v108, 0
    %251 = vmatprep.subr.bf16.mxu0 0
    %252 = vmatpush1.bf16.msra.mxu0 0
    %253 = vmatprep.subr.bf16.mxu0 0
    %254 = vmatpush1.bf16.msra.mxu0 0
    %255 = vmatprep.subr.bf16.mxu0 0
    %256 = vmatpush1.bf16.msra.mxu0 0
    %257 = vmatprep.subr.bf16.mxu0 0
    %258 = vmatpush1.bf16.msra.mxu0 0
    %259 = vmatprep.subr.bf16.mxu0 0
    %260 = vmatpush1.bf16.msra.mxu0 0
    %261 = vmatprep.subr.bf16.mxu0 0
    %262 = vmatpush1.bf16.msra.mxu0 0
    %263 = vmatprep.subr.bf16.mxu0 %v224
    %264 = vmatpush1.bf16.msra.mxu0 %v223
    %265 = vmatprep.subr.bf16.mxu0 %v216
    %266 = vmatpush1.bf16.msra.mxu0 %v215
    %267 = vmatprep.subr.bf16.mxu0 0
    %268 = vmatpush2.bf16.msra.mxu0 0
    %269 = vmatprep.subr.bf16.mxu0 0
    %270 = vmatpush2.bf16.msra.mxu0 0
    %271 = vmatprep.subr.bf16.mxu0 0
    %272 = vmatpush2.bf16.msra.mxu0 0
    %273 = vmatprep.subr.bf16.mxu0 0
    %274 = vmatpush2.bf16.msra.mxu0 0
    %275 = vmatprep.subr.bf16.mxu0 0
    %276 = vmatpush2.bf16.msra.mxu0 0
    %277 = vmatprep.subr.bf16.mxu0 0
    %278 = vmatpush2.bf16.msra.mxu0 0
    %279 = vmatprep.subr.bf16.mxu0 0
    %280 = vmatpush2.bf16.msra.mxu0 0
    %281 = vmatprep.subr.bf16.mxu0 0
    %282 = vmatpush2.bf16.msra.mxu0 0
    %283 = vmatprep.mubr.bf16.mxu0 0
    %284 = vmatmul.mubr.bf16.gmra.mxu0 %v249
    %v285 = vpop.f32.mrf.mxu0
    %v286 = vadd.f32 %v130, %v285
    %v287 = vpop.f32.mrf.mxu0
    %v288 = vadd.f32 %v134, %v287
    %v289 = vpop.f32.mrf.mxu0
    %v290 = vpop.f32.mrf.mxu0
    %291 = vdwg.mxu0
    %292 = vmatprep.subr.bf16.mxu0 0
    %293 = vmatpush1.bf16.msra.mxu0 0
    %294 = vmatprep.subr.bf16.mxu0 0
    %295 = vmatpush1.bf16.msra.mxu0 0
    %296 = vmatprep.subr.bf16.mxu0 0
    %297 = vmatpush1.bf16.msra.mxu0 0
    %298 = vmatprep.subr.bf16.mxu0 0
    %299 = vmatpush1.bf16.msra.mxu0 0
    %300 = vmatprep.subr.bf16.mxu0 0
    %301 = vmatpush1.bf16.msra.mxu0 0
    %302 = vmatprep.subr.bf16.mxu0 0
    %303 = vmatpush1.bf16.msra.mxu0 0
    %304 = vmatprep.subr.bf16.mxu0 %v226
    %305 = vmatpush1.bf16.msra.mxu0 %v225
    %306 = vmatprep.subr.bf16.mxu0 %v218
    %307 = vmatpush1.bf16.msra.mxu0 %v217
    %308 = vmatprep.subr.bf16.mxu0 0
    %309 = vmatpush2.bf16.msra.mxu0 0
    %310 = vmatprep.subr.bf16.mxu0 0
    %311 = vmatpush2.bf16.msra.mxu0 0
    %312 = vmatprep.subr.bf16.mxu0 0
    %313 = vmatpush2.bf16.msra.mxu0 0
    %314 = vmatprep.subr.bf16.mxu0 0
    %315 = vmatpush2.bf16.msra.mxu0 0
    %316 = vmatprep.subr.bf16.mxu0 0
    %317 = vmatpush2.bf16.msra.mxu0 0
    %318 = vmatprep.subr.bf16.mxu0 0
    %319 = vmatpush2.bf16.msra.mxu0 0
    %320 = vmatprep.subr.bf16.mxu0 0
    %321 = vmatpush2.bf16.msra.mxu0 0
    %322 = vmatprep.subr.bf16.mxu0 0
    %323 = vmatpush2.bf16.msra.mxu0 0
    %324 = vmatprep.mubr.bf16.mxu0 0
    %325 = vmatmul.mubr.bf16.gmra.mxu0 %v249
    %v326 = vpop.f32.mrf.mxu0
    %v327 = vadd.f32 %v138, %v326
    %v328 = vpop.f32.mrf.mxu0
    %v329 = vadd.f32 %v142, %v328
    %v330 = vpop.f32.mrf.mxu0
    %v331 = vpop.f32.mrf.mxu0
    %332 = vdwg.mxu0
    %333 = vmatprep.subr.bf16.mxu0 0
    %334 = vmatpush1.bf16.msra.mxu0 0
    %335 = vmatprep.subr.bf16.mxu0 0
    %336 = vmatpush1.bf16.msra.mxu0 0
    %337 = vmatprep.subr.bf16.mxu0 0
    %338 = vmatpush1.bf16.msra.mxu0 0
    %339 = vmatprep.subr.bf16.mxu0 0
    %340 = vmatpush1.bf16.msra.mxu0 0
    %341 = vmatprep.subr.bf16.mxu0 0
    %342 = vmatpush1.bf16.msra.mxu0 0
    %343 = vmatprep.subr.bf16.mxu0 0
    %344 = vmatpush1.bf16.msra.mxu0 0
    %345 = vmatprep.subr.bf16.mxu0 %v228
    %346 = vmatpush1.bf16.msra.mxu0 %v227
    %347 = vmatprep.subr.bf16.mxu0 %v220
    %348 = vmatpush1.bf16.msra.mxu0 %v219
    %349 = vmatprep.subr.bf16.mxu0 0
    %350 = vmatpush2.bf16.msra.mxu0 0
    %351 = vmatprep.subr.bf16.mxu0 0
    %352 = vmatpush2.bf16.msra.mxu0 0
    %353 = vmatprep.subr.bf16.mxu0 0
    %354 = vmatpush2.bf16.msra.mxu0 0
    %355 = vmatprep.subr.bf16.mxu0 0
    %356 = vmatpush2.bf16.msra.mxu0 0
    %357 = vmatprep.subr.bf16.mxu0 0
    %358 = vmatpush2.bf16.msra.mxu0 0
    %359 = vmatprep.subr.bf16.mxu0 0
    %360 = vmatpush2.bf16.msra.mxu0 0
    %361 = vmatprep.subr.bf16.mxu0 0
    %362 = vmatpush2.bf16.msra.mxu0 0
    %363 = vmatprep.subr.bf16.mxu0 0
    %364 = vmatpush2.bf16.msra.mxu0 0
    %365 = vmatprep.mubr.bf16.mxu0 0
    %366 = vmatmul.mubr.bf16.gmra.mxu0 %v249
    %v367 = vpop.f32.mrf.mxu0
    %v368 = vadd.f32 %v146, %v367
    %v369 = vpop.f32.mrf.mxu0
    %v370 = vadd.f32 %v150, %v369
    %v371 = vpop.f32.mrf.mxu0
    %v372 = vpop.f32.mrf.mxu0
    %373 = vdwg.mxu0
    %374 = vmatprep.subr.bf16.mxu0 0
    %375 = vmatpush1.bf16.msra.mxu0 0
    %376 = vmatprep.subr.bf16.mxu0 0
    %377 = vmatpush1.bf16.msra.mxu0 0
    %378 = vmatprep.subr.bf16.mxu0 0
    %379 = vmatpush1.bf16.msra.mxu0 0
    %380 = vmatprep.subr.bf16.mxu0 0
    %381 = vmatpush1.bf16.msra.mxu0 0
    %382 = vmatprep.subr.bf16.mxu0 0
    %383 = vmatpush1.bf16.msra.mxu0 0
    %384 = vmatprep.subr.bf16.mxu0 0
    %385 = vmatpush1.bf16.msra.mxu0 0
    %386 = vmatprep.subr.bf16.mxu0 %v230
    %387 = vmatpush1.bf16.msra.mxu0 %v229
    %388 = vmatprep.subr.bf16.mxu0 %v222
    %389 = vmatpush1.bf16.msra.mxu0 %v221
    %390 = vmatprep.subr.bf16.mxu0 0
    %391 = vmatpush2.bf16.msra.mxu0 0
    %392 = vmatprep.subr.bf16.mxu0 0
    %393 = vmatpush2.bf16.msra.mxu0 0
    %394 = vmatprep.subr.bf16.mxu0 0
    %395 = vmatpush2.bf16.msra.mxu0 0
    %396 = vmatprep.subr.bf16.mxu0 0
    %397 = vmatpush2.bf16.msra.mxu0 0
    %398 = vmatprep.subr.bf16.mxu0 0
    %399 = vmatpush2.bf16.msra.mxu0 0
    %400 = vmatprep.subr.bf16.mxu0 0
    %401 = vmatpush2.bf16.msra.mxu0 0
    %402 = vmatprep.subr.bf16.mxu0 0
    %403 = vmatpush2.bf16.msra.mxu0 0
    %404 = vmatprep.subr.bf16.mxu0 0
    %405 = vmatpush2.bf16.msra.mxu0 0
    %406 = vmatprep.mubr.bf16.mxu0 0
    %407 = vmatmul.mubr.bf16.gmra.mxu0 %v249
    %v408 = vpop.f32.mrf.mxu0
    %v409 = vadd.f32 %v154, %v408
    %v410 = vpop.f32.mrf.mxu0
    %v411 = vadd.f32 %v158, %v410
    %v412 = vpop.f32.mrf.mxu0
    %v413 = vpop.f32.mrf.mxu0
    %414 = vdwg.mxu0
    %vm415 = vcmp.ge.f32.partialorder %v286, 0.0
    %vm416 = vcmp.ge.f32.partialorder %v288, 0.0
    %vm417 = vcmp.ge.f32.partialorder %v327, 0.0
    %vm418 = vcmp.ge.f32.partialorder %v329, 0.0
    %vm419 = vcmp.ge.f32.partialorder %v368, 0.0
    %vm420 = vcmp.ge.f32.partialorder %v370, 0.0
    %vm421 = vcmp.ge.f32.partialorder %v409, 0.0
    %vm422 = vcmp.ge.f32.partialorder %v411, 0.0
    %s423 = sld [smem:[#allocation12]]
    %v424 = vstv %s423
    %v425 = vmul.f32 %v424, %v286
    %v426 = vmul.f32 %v424, %v288
    %v427 = vmul.f32 %v424, %v327
    %v428 = vmul.f32 %v424, %v329
    %v429 = vmul.f32 %v424, %v368
    %v430 = vmul.f32 %v424, %v370
    %v431 = vmul.f32 %v424, %v409
    %v432 = vmul.f32 %v424, %v411
    %v433 = vsel %vm415, %v286, %v425
    %v434 = vsel %vm416, %v288, %v426
    %v435 = vsel %vm417, %v327, %v427
    %v436 = vsel %vm418, %v329, %v428
    %v437 = vsel %vm419, %v368, %v429
    %v438 = vsel %vm420, %v370, %v430
    %v439 = vsel %vm421, %v409, %v431
    %v440 = vsel %vm422, %v411, %v432
    %v441 = vpack.c.bf16 %v433, %v433
    %v442 = vpack.c.bf16 %v434, %v434
    %v443 = vpack.c.bf16 %v435, %v435
    %v444 = vpack.c.bf16 %v436, %v436
    %v445 = vpack.c.bf16 %v437, %v437
    %v446 = vpack.c.bf16 %v438, %v438
    %v447 = vpack.c.bf16 %v439, %v439
    %v448 = vpack.c.bf16 %v440, %v440
    %v449 = vld [vmem:[#allocation9] sm:$0xff]
    %v450 = vld [vmem:[#allocation9 + $0x8] sm:$0xff]
    %v451 = vld [vmem:[#allocation9 + $0x10] sm:$0xff]
    %v452 = vld [vmem:[#allocation9 + $0x18] sm:$0xff]
    %v453 = vld [vmem:[#allocation9 + $0x20] sm:$0xff]
    %v454 = vld [vmem:[#allocation9 + $0x28] sm:$0xff]
    %v455 = vld [vmem:[#allocation9 + $0x30] sm:$0xff]
    %v456 = vld [vmem:[#allocation9 + $0x38] sm:$0xff]
    %v457 = vld [vmem:[#allocation9 + $0x40] sm:$0xff]
    %v458 = vld [vmem:[#allocation9 + $0x48] sm:$0xff]
    %v459 = vld [vmem:[#allocation9 + $0x50] sm:$0xff]
    %v460 = vld [vmem:[#allocation9 + $0x58] sm:$0xff]
    %v461 = vld [vmem:[#allocation9 + $0x60] sm:$0xff]
    %v462 = vld [vmem:[#allocation9 + $0x68] sm:$0xff]
    %v463 = vld [vmem:[#allocation9 + $0x70] sm:$0xff]
    %v464 = vld [vmem:[#allocation9 + $0x78] sm:$0xff]
    %v465 = vld [vmem:[#allocation9 + $0x80] sm:$0xff]
    %v466 = vld [vmem:[#allocation9 + $0x88] sm:$0xff]
    %v467 = vld [vmem:[#allocation9 + $0x90] sm:$0xff]
    %v468 = vld [vmem:[#allocation9 + $0x98] sm:$0xff]
    %v469 = vld [vmem:[#allocation9 + $0xa0] sm:$0xff]
    %v470 = vld [vmem:[#allocation9 + $0xa8] sm:$0xff]
    %v471 = vld [vmem:[#allocation9 + $0xb0] sm:$0xff]
    %v472 = vld [vmem:[#allocation9 + $0xb8] sm:$0xff]
    %v473 = vld [vmem:[#allocation9 + $0xc0] sm:$0xff]
    %v474 = vld [vmem:[#allocation9 + $0xc8] sm:$0xff]
    %v475 = vld [vmem:[#allocation9 + $0xd0] sm:$0xff]
    %v476 = vld [vmem:[#allocation9 + $0xd8] sm:$0xff]
    %v477 = vld [vmem:[#allocation9 + $0xe0] sm:$0xff]
    %v478 = vld [vmem:[#allocation9 + $0xe8] sm:$0xff]
    %v479 = vld [vmem:[#allocation9 + $0xf0] sm:$0xff]
    %v480 = vld [vmem:[#allocation9 + $0xf8] sm:$0xff]
    %v481 = vld [vmem:[#allocation9 + $0x100] sm:$0xff]
    %v482 = vld [vmem:[#allocation9 + $0x108] sm:$0xff]
    %v483 = vld [vmem:[#allocation9 + $0x110] sm:$0xff]
    %v484 = vld [vmem:[#allocation9 + $0x118] sm:$0xff]
    %v485 = vld [vmem:[#allocation9 + $0x120] sm:$0xff]
    %v486 = vld [vmem:[#allocation9 + $0x128] sm:$0xff]
    %v487 = vld [vmem:[#allocation9 + $0x130] sm:$0xff]
    %v488 = vld [vmem:[#allocation9 + $0x138] sm:$0xff]
    %v489 = vld [vmem:[#allocation9 + $0x140] sm:$0xff]
    %v490 = vld [vmem:[#allocation9 + $0x148] sm:$0xff]
    %v491 = vld [vmem:[#allocation9 + $0x150] sm:$0xff]
    %v492 = vld [vmem:[#allocation9 + $0x158] sm:$0xff]
    %v493 = vld [vmem:[#allocation9 + $0x160] sm:$0xff]
    %v494 = vld [vmem:[#allocation9 + $0x168] sm:$0xff]
    %v495 = vld [vmem:[#allocation9 + $0x170] sm:$0xff]
    %v496 = vld [vmem:[#allocation9 + $0x178] sm:$0xff]
    %v497 = vld [vmem:[#allocation9 + $0x180] sm:$0xff]
    %v498 = vld [vmem:[#allocation9 + $0x188] sm:$0xff]
    %v499 = vld [vmem:[#allocation9 + $0x190] sm:$0xff]
    %v500 = vld [vmem:[#allocation9 + $0x198] sm:$0xff]
    %v501 = vld [vmem:[#allocation9 + $0x1a0] sm:$0xff]
    %v502 = vld [vmem:[#allocation9 + $0x1a8] sm:$0xff]
    %v503 = vld [vmem:[#allocation9 + $0x1b0] sm:$0xff]
    %v504 = vld [vmem:[#allocation9 + $0x1b8] sm:$0xff]
    %v505 = vld [vmem:[#allocation9 + $0x1c0] sm:$0xff]
    %v506 = vld [vmem:[#allocation9 + $0x1c8] sm:$0xff]
    %v507 = vld [vmem:[#allocation9 + $0x1d0] sm:$0xff]
    %v508 = vld [vmem:[#allocation9 + $0x1d8] sm:$0xff]
    %v509 = vld [vmem:[#allocation9 + $0x1e0] sm:$0xff]
    %v510 = vld [vmem:[#allocation9 + $0x1e8] sm:$0xff]
    %v511 = vld [vmem:[#allocation9 + $0x1f0] sm:$0xff]
    %v512 = vld [vmem:[#allocation9 + $0x1f8] sm:$0xff]
    %v513 = vld [vmem:[#allocation9 + $0x200] sm:$0xff]
    %v514 = vld [vmem:[#allocation9 + $0x208] sm:$0xff]
    %v515 = vld [vmem:[#allocation9 + $0x210] sm:$0xff]
    %v516 = vld [vmem:[#allocation9 + $0x218] sm:$0xff]
    %v517 = vld [vmem:[#allocation9 + $0x220] sm:$0xff]
    %v518 = vld [vmem:[#allocation9 + $0x228] sm:$0xff]
    %v519 = vld [vmem:[#allocation9 + $0x230] sm:$0xff]
    %v520 = vld [vmem:[#allocation9 + $0x238] sm:$0xff]
    %v521 = vld [vmem:[#allocation9 + $0x240] sm:$0xff]
    %v522 = vld [vmem:[#allocation9 + $0x248] sm:$0xff]
    %v523 = vld [vmem:[#allocation9 + $0x250] sm:$0xff]
    %v524 = vld [vmem:[#allocation9 + $0x258] sm:$0xff]
    %v525 = vld [vmem:[#allocation9 + $0x260] sm:$0xff]
    %v526 = vld [vmem:[#allocation9 + $0x268] sm:$0xff]
    %v527 = vld [vmem:[#allocation9 + $0x270] sm:$0xff]
    %v528 = vld [vmem:[#allocation9 + $0x278] sm:$0xff]
    %v529 = vld [vmem:[#allocation9 + $0x280] sm:$0xff]
    %v530 = vld [vmem:[#allocation9 + $0x288] sm:$0xff]
    %v531 = vld [vmem:[#allocation9 + $0x290] sm:$0xff]
    %v532 = vld [vmem:[#allocation9 + $0x298] sm:$0xff]
    %v533 = vld [vmem:[#allocation9 + $0x2a0] sm:$0xff]
    %v534 = vld [vmem:[#allocation9 + $0x2a8] sm:$0xff]
    %v535 = vld [vmem:[#allocation9 + $0x2b0] sm:$0xff]
    %v536 = vld [vmem:[#allocation9 + $0x2b8] sm:$0xff]
    %v537 = vld [vmem:[#allocation9 + $0x2c0] sm:$0xff]
    %v538 = vld [vmem:[#allocation9 + $0x2c8] sm:$0xff]
    %v539 = vld [vmem:[#allocation9 + $0x2d0] sm:$0xff]
    %v540 = vld [vmem:[#allocation9 + $0x2d8] sm:$0xff]
    %v541 = vld [vmem:[#allocation9 + $0x2e0] sm:$0xff]
    %v542 = vld [vmem:[#allocation9 + $0x2e8] sm:$0xff]
    %v543 = vld [vmem:[#allocation9 + $0x2f0] sm:$0xff]
    %v544 = vld [vmem:[#allocation9 + $0x2f8] sm:$0xff]
    %v545 = vld [vmem:[#allocation9 + $0x300] sm:$0xff]
    %v546 = vld [vmem:[#allocation9 + $0x308] sm:$0xff]
    %v547 = vld [vmem:[#allocation9 + $0x310] sm:$0xff]
    %v548 = vld [vmem:[#allocation9 + $0x318] sm:$0xff]
    %v549 = vld [vmem:[#allocation9 + $0x320] sm:$0xff]
    %v550 = vld [vmem:[#allocation9 + $0x328] sm:$0xff]
    %v551 = vld [vmem:[#allocation9 + $0x330] sm:$0xff]
    %v552 = vld [vmem:[#allocation9 + $0x338] sm:$0xff]
    %v553 = vld [vmem:[#allocation9 + $0x340] sm:$0xff]
    %v554 = vld [vmem:[#allocation9 + $0x348] sm:$0xff]
    %v555 = vld [vmem:[#allocation9 + $0x350] sm:$0xff]
    %v556 = vld [vmem:[#allocation9 + $0x358] sm:$0xff]
    %v557 = vld [vmem:[#allocation9 + $0x360] sm:$0xff]
    %v558 = vld [vmem:[#allocation9 + $0x368] sm:$0xff]
    %v559 = vld [vmem:[#allocation9 + $0x370] sm:$0xff]
    %v560 = vld [vmem:[#allocation9 + $0x378] sm:$0xff]
    %v561 = vld [vmem:[#allocation9 + $0x380] sm:$0xff]
    %v562 = vld [vmem:[#allocation9 + $0x388] sm:$0xff]
    %v563 = vld [vmem:[#allocation9 + $0x390] sm:$0xff]
    %v564 = vld [vmem:[#allocation9 + $0x398] sm:$0xff]
    %v565 = vld [vmem:[#allocation9 + $0x3a0] sm:$0xff]
    %v566 = vld [vmem:[#allocation9 + $0x3a8] sm:$0xff]
    %v567 = vld [vmem:[#allocation9 + $0x3b0] sm:$0xff]
    %v568 = vld [vmem:[#allocation9 + $0x3b8] sm:$0xff]
    %v569 = vld [vmem:[#allocation9 + $0x3c0] sm:$0xff]
    %v570 = vld [vmem:[#allocation9 + $0x3c8] sm:$0xff]
    %v571 = vld [vmem:[#allocation9 + $0x3d0] sm:$0xff]
    %v572 = vld [vmem:[#allocation9 + $0x3d8] sm:$0xff]
    %v573 = vld [vmem:[#allocation9 + $0x3e0] sm:$0xff]
    %v574 = vld [vmem:[#allocation9 + $0x3e8] sm:$0xff]
    %v575 = vld [vmem:[#allocation9 + $0x3f0] sm:$0xff]
    %v576 = vld [vmem:[#allocation9 + $0x3f8] sm:$0xff]
    %v577 = vld [vmem:[#allocation9 + $0x400] sm:$0xff]
    %v578 = vld [vmem:[#allocation9 + $0x408] sm:$0xff]
    %v579 = vld [vmem:[#allocation9 + $0x410] sm:$0xff]
    %v580 = vld [vmem:[#allocation9 + $0x418] sm:$0xff]
    %v581 = vld [vmem:[#allocation9 + $0x420] sm:$0xff]
    %v582 = vld [vmem:[#allocation9 + $0x428] sm:$0xff]
    %v583 = vld [vmem:[#allocation9 + $0x430] sm:$0xff]
    %v584 = vld [vmem:[#allocation9 + $0x438] sm:$0xff]
    %v585 = vld [vmem:[#allocation9 + $0x440] sm:$0xff]
    %v586 = vld [vmem:[#allocation9 + $0x448] sm:$0xff]
    %v587 = vld [vmem:[#allocation9 + $0x450] sm:$0xff]
    %v588 = vld [vmem:[#allocation9 + $0x458] sm:$0xff]
    %v589 = vld [vmem:[#allocation9 + $0x460] sm:$0xff]
    %v590 = vld [vmem:[#allocation9 + $0x468] sm:$0xff]
    %v591 = vld [vmem:[#allocation9 + $0x470] sm:$0xff]
    %v592 = vld [vmem:[#allocation9 + $0x478] sm:$0xff]
    %v593 = vld [vmem:[#allocation9 + $0x480] sm:$0xff]
    %v594 = vld [vmem:[#allocation9 + $0x488] sm:$0xff]
    %v595 = vld [vmem:[#allocation9 + $0x490] sm:$0xff]
    %v596 = vld [vmem:[#allocation9 + $0x498] sm:$0xff]
    %v597 = vld [vmem:[#allocation9 + $0x4a0] sm:$0xff]
    %v598 = vld [vmem:[#allocation9 + $0x4a8] sm:$0xff]
    %v599 = vld [vmem:[#allocation9 + $0x4b0] sm:$0xff]
    %v600 = vld [vmem:[#allocation9 + $0x4b8] sm:$0xff]
    %v601 = vld [vmem:[#allocation9 + $0x4c0] sm:$0xff]
    %v602 = vld [vmem:[#allocation9 + $0x4c8] sm:$0xff]
    %v603 = vld [vmem:[#allocation9 + $0x4d0] sm:$0xff]
    %v604 = vld [vmem:[#allocation9 + $0x4d8] sm:$0xff]
    %v605 = vld [vmem:[#allocation9 + $0x4e0] sm:$0xff]
    %v606 = vld [vmem:[#allocation9 + $0x4e8] sm:$0xff]
    %v607 = vld [vmem:[#allocation9 + $0x4f0] sm:$0xff]
    %v608 = vld [vmem:[#allocation9 + $0x4f8] sm:$0xff]
    %v609 = vld [vmem:[#allocation9 + $0x500] sm:$0xff]
    %v610 = vld [vmem:[#allocation9 + $0x508] sm:$0xff]
    %v611 = vld [vmem:[#allocation9 + $0x510] sm:$0xff]
    %v612 = vld [vmem:[#allocation9 + $0x518] sm:$0xff]
    %v613 = vld [vmem:[#allocation9 + $0x520] sm:$0xff]
    %v614 = vld [vmem:[#allocation9 + $0x528] sm:$0xff]
    %v615 = vld [vmem:[#allocation9 + $0x530] sm:$0xff]
    %v616 = vld [vmem:[#allocation9 + $0x538] sm:$0xff]
    %v617 = vld [vmem:[#allocation9 + $0x540] sm:$0xff]
    %v618 = vld [vmem:[#allocation9 + $0x548] sm:$0xff]
    %v619 = vld [vmem:[#allocation9 + $0x550] sm:$0xff]
    %v620 = vld [vmem:[#allocation9 + $0x558] sm:$0xff]
    %v621 = vld [vmem:[#allocation9 + $0x560] sm:$0xff]
    %v622 = vld [vmem:[#allocation9 + $0x568] sm:$0xff]
    %v623 = vld [vmem:[#allocation9 + $0x570] sm:$0xff]
    %v624 = vld [vmem:[#allocation9 + $0x578] sm:$0xff]
    %v625 = vld [vmem:[#allocation9 + $0x580] sm:$0xff]
    %v626 = vld [vmem:[#allocation9 + $0x588] sm:$0xff]
    %v627 = vld [vmem:[#allocation9 + $0x590] sm:$0xff]
    %v628 = vld [vmem:[#allocation9 + $0x598] sm:$0xff]
    %v629 = vld [vmem:[#allocation9 + $0x5a0] sm:$0xff]
    %v630 = vld [vmem:[#allocation9 + $0x5a8] sm:$0xff]
    %v631 = vld [vmem:[#allocation9 + $0x5b0] sm:$0xff]
    %v632 = vld [vmem:[#allocation9 + $0x5b8] sm:$0xff]
    %v633 = vld [vmem:[#allocation9 + $0x5c0] sm:$0xff]
    %v634 = vld [vmem:[#allocation9 + $0x5c8] sm:$0xff]
    %v635 = vld [vmem:[#allocation9 + $0x5d0] sm:$0xff]
    %v636 = vld [vmem:[#allocation9 + $0x5d8] sm:$0xff]
    %v637 = vld [vmem:[#allocation9 + $0x5e0] sm:$0xff]
    %v638 = vld [vmem:[#allocation9 + $0x5e8] sm:$0xff]
    %v639 = vld [vmem:[#allocation9 + $0x5f0] sm:$0xff]
    %v640 = vld [vmem:[#allocation9 + $0x5f8] sm:$0xff]
    %v641 = vld [vmem:[#allocation9 + $0x600] sm:$0xff]
    %v642 = vld [vmem:[#allocation9 + $0x608] sm:$0xff]
    %v643 = vld [vmem:[#allocation9 + $0x610] sm:$0xff]
    %v644 = vld [vmem:[#allocation9 + $0x618] sm:$0xff]
    %v645 = vld [vmem:[#allocation9 + $0x620] sm:$0xff]
    %v646 = vld [vmem:[#allocation9 + $0x628] sm:$0xff]
    %v647 = vld [vmem:[#allocation9 + $0x630] sm:$0xff]
    %v648 = vld [vmem:[#allocation9 + $0x638] sm:$0xff]
    %v649 = vld [vmem:[#allocation9 + $0x640] sm:$0xff]
    %v650 = vld [vmem:[#allocation9 + $0x648] sm:$0xff]
    %v651 = vld [vmem:[#allocation9 + $0x650] sm:$0xff]
    %v652 = vld [vmem:[#allocation9 + $0x658] sm:$0xff]
    %v653 = vld [vmem:[#allocation9 + $0x660] sm:$0xff]
    %v654 = vld [vmem:[#allocation9 + $0x668] sm:$0xff]
    %v655 = vld [vmem:[#allocation9 + $0x670] sm:$0xff]
    %v656 = vld [vmem:[#allocation9 + $0x678] sm:$0xff]
    %v657 = vld [vmem:[#allocation9 + $0x680] sm:$0xff]
    %v658 = vld [vmem:[#allocation9 + $0x688] sm:$0xff]
    %v659 = vld [vmem:[#allocation9 + $0x690] sm:$0xff]
    %v660 = vld [vmem:[#allocation9 + $0x698] sm:$0xff]
    %v661 = vld [vmem:[#allocation9 + $0x6a0] sm:$0xff]
    %v662 = vld [vmem:[#allocation9 + $0x6a8] sm:$0xff]
    %v663 = vld [vmem:[#allocation9 + $0x6b0] sm:$0xff]
    %v664 = vld [vmem:[#allocation9 + $0x6b8] sm:$0xff]
    %v665 = vld [vmem:[#allocation9 + $0x6c0] sm:$0xff]
    %v666 = vld [vmem:[#allocation9 + $0x6c8] sm:$0xff]
    %v667 = vld [vmem:[#allocation9 + $0x6d0] sm:$0xff]
    %v668 = vld [vmem:[#allocation9 + $0x6d8] sm:$0xff]
    %v669 = vld [vmem:[#allocation9 + $0x6e0] sm:$0xff]
    %v670 = vld [vmem:[#allocation9 + $0x6e8] sm:$0xff]
    %v671 = vld [vmem:[#allocation9 + $0x6f0] sm:$0xff]
    %v672 = vld [vmem:[#allocation9 + $0x6f8] sm:$0xff]
    %v673 = vld [vmem:[#allocation9 + $0x700] sm:$0xff]
    %v674 = vld [vmem:[#allocation9 + $0x708] sm:$0xff]
    %v675 = vld [vmem:[#allocation9 + $0x710] sm:$0xff]
    %v676 = vld [vmem:[#allocation9 + $0x718] sm:$0xff]
    %v677 = vld [vmem:[#allocation9 + $0x720] sm:$0xff]
    %v678 = vld [vmem:[#allocation9 + $0x728] sm:$0xff]
    %v679 = vld [vmem:[#allocation9 + $0x730] sm:$0xff]
    %v680 = vld [vmem:[#allocation9 + $0x738] sm:$0xff]
    %v681 = vld [vmem:[#allocation9 + $0x740] sm:$0xff]
    %v682 = vld [vmem:[#allocation9 + $0x748] sm:$0xff]
    %v683 = vld [vmem:[#allocation9 + $0x750] sm:$0xff]
    %v684 = vld [vmem:[#allocation9 + $0x758] sm:$0xff]
    %v685 = vld [vmem:[#allocation9 + $0x760] sm:$0xff]
    %v686 = vld [vmem:[#allocation9 + $0x768] sm:$0xff]
    %v687 = vld [vmem:[#allocation9 + $0x770] sm:$0xff]
    %v688 = vld [vmem:[#allocation9 + $0x778] sm:$0xff]
    %v689 = vld [vmem:[#allocation9 + $0x780] sm:$0xff]
    %v690 = vld [vmem:[#allocation9 + $0x788] sm:$0xff]
    %v691 = vld [vmem:[#allocation9 + $0x790] sm:$0xff]
    %v692 = vld [vmem:[#allocation9 + $0x798] sm:$0xff]
    %v693 = vld [vmem:[#allocation9 + $0x7a0] sm:$0xff]
    %v694 = vld [vmem:[#allocation9 + $0x7a8] sm:$0xff]
    %v695 = vld [vmem:[#allocation9 + $0x7b0] sm:$0xff]
    %v696 = vld [vmem:[#allocation9 + $0x7b8] sm:$0xff]
    %v697 = vld [vmem:[#allocation9 + $0x7c0] sm:$0xff]
    %v698 = vld [vmem:[#allocation9 + $0x7c8] sm:$0xff]
    %v699 = vld [vmem:[#allocation9 + $0x7d0] sm:$0xff]
    %v700 = vld [vmem:[#allocation9 + $0x7d8] sm:$0xff]
    %v701 = vld [vmem:[#allocation9 + $0x7e0] sm:$0xff]
    %v702 = vld [vmem:[#allocation9 + $0x7e8] sm:$0xff]
    %v703 = vld [vmem:[#allocation9 + $0x7f0] sm:$0xff]
    %v704 = vld [vmem:[#allocation9 + $0x7f8] sm:$0xff]
    %v705 = vld [vmem:[%s4] sm:$0xf]
    %v707 = vlaneseq
    %v708 = vshrl.u32 %v707, 7
    %v709 = vsub.s32 0, %v708
    %v710 = vrot.slane %v705, %v709
    %v711 = vlaneseq
    %v712 = vshrl.u32 %v711, 7
    %v713 = vsub.s32 1, %v712
    %v714 = vrot.slane %v705, %v713
    %v715 = vlaneseq
    %v716 = vshrl.u32 %v715, 7
    %v717 = vsub.s32 2, %v716
    %v718 = vrot.slane %v705, %v717
    %v719 = vlaneseq
    %v720 = vshrl.u32 %v719, 7
    %v721 = vsub.s32 3, %v720
    %v722 = vrot.slane %v705, %v721
    %v983 = vunpack.c.l.b16 %v449
    %v984 = vunpack.c.h.b16 %v449
    %v985 = vunpack.c.l.b16 %v450
    %v986 = vunpack.c.h.b16 %v450
    %v987 = vunpack.c.l.b16 %v451
    %v988 = vunpack.c.h.b16 %v451
    %v989 = vunpack.c.l.b16 %v452
    %v990 = vunpack.c.h.b16 %v452
    %v991 = vunpack.c.l.b16 %v453
    %v992 = vunpack.c.h.b16 %v453
    %v993 = vunpack.c.l.b16 %v454
    %v994 = vunpack.c.h.b16 %v454
    %v995 = vunpack.c.l.b16 %v455
    %v996 = vunpack.c.h.b16 %v455
    %v997 = vunpack.c.l.b16 %v456
    %v998 = vunpack.c.h.b16 %v456
    %v999 = vunpack.c.l.b16 %v457
    %v1000 = vunpack.c.h.b16 %v457
    %v1001 = vunpack.c.l.b16 %v458
    %v1002 = vunpack.c.h.b16 %v458
    %v1003 = vunpack.c.l.b16 %v459
    %v1004 = vunpack.c.h.b16 %v459
    %v1005 = vunpack.c.l.b16 %v460
    %v1006 = vunpack.c.h.b16 %v460
    %v1007 = vunpack.c.l.b16 %v461
    %v1008 = vunpack.c.h.b16 %v461
    %v1009 = vunpack.c.l.b16 %v462
    %v1010 = vunpack.c.h.b16 %v462
    %v1011 = vunpack.c.l.b16 %v463
    %v1012 = vunpack.c.h.b16 %v463
    %v1013 = vunpack.c.l.b16 %v464
    %v1014 = vunpack.c.h.b16 %v464
    %v1015 = vunpack.c.l.b16 %v465
    %v1016 = vunpack.c.h.b16 %v465
    %v1017 = vunpack.c.l.b16 %v466
    %v1018 = vunpack.c.h.b16 %v466
    %v1019 = vunpack.c.l.b16 %v467
    %v1020 = vunpack.c.h.b16 %v467
    %v1021 = vunpack.c.l.b16 %v468
    %v1022 = vunpack.c.h.b16 %v468
    %v1023 = vunpack.c.l.b16 %v469
    %v1024 = vunpack.c.h.b16 %v469
    %v1025 = vunpack.c.l.b16 %v470
    %v1026 = vunpack.c.h.b16 %v470
    %v1027 = vunpack.c.l.b16 %v471
    %v1028 = vunpack.c.h.b16 %v471
    %v1029 = vunpack.c.l.b16 %v472
    %v1030 = vunpack.c.h.b16 %v472
    %v1031 = vunpack.c.l.b16 %v473
    %v1032 = vunpack.c.h.b16 %v473
    %v1033 = vunpack.c.l.b16 %v474
    %v1034 = vunpack.c.h.b16 %v474
    %v1035 = vunpack.c.l.b16 %v475
    %v1036 = vunpack.c.h.b16 %v475
    %v1037 = vunpack.c.l.b16 %v476
    %v1038 = vunpack.c.h.b16 %v476
    %v1039 = vunpack.c.l.b16 %v477
    %v1040 = vunpack.c.h.b16 %v477
    %v1041 = vunpack.c.l.b16 %v478
    %v1042 = vunpack.c.h.b16 %v478
    %v1043 = vunpack.c.l.b16 %v479
    %v1044 = vunpack.c.h.b16 %v479
    %v1045 = vunpack.c.l.b16 %v480
    %v1046 = vunpack.c.h.b16 %v480
    %v1047 = vunpack.c.l.b16 %v481
    %v1048 = vunpack.c.h.b16 %v481
    %v1049 = vunpack.c.l.b16 %v482
    %v1050 = vunpack.c.h.b16 %v482
    %v1051 = vunpack.c.l.b16 %v483
    %v1052 = vunpack.c.h.b16 %v483
    %v1053 = vunpack.c.l.b16 %v484
    %v1054 = vunpack.c.h.b16 %v484
    %v1055 = vunpack.c.l.b16 %v485
    %v1056 = vunpack.c.h.b16 %v485
    %v1057 = vunpack.c.l.b16 %v486
    %v1058 = vunpack.c.h.b16 %v486
    %v1059 = vunpack.c.l.b16 %v487
    %v1060 = vunpack.c.h.b16 %v487
    %v1061 = vunpack.c.l.b16 %v488
    %v1062 = vunpack.c.h.b16 %v488
    %v1063 = vunpack.c.l.b16 %v489
    %v1064 = vunpack.c.h.b16 %v489
    %v1065 = vunpack.c.l.b16 %v490
    %v1066 = vunpack.c.h.b16 %v490
    %v1067 = vunpack.c.l.b16 %v491
    %v1068 = vunpack.c.h.b16 %v491
    %v1069 = vunpack.c.l.b16 %v492
    %v1070 = vunpack.c.h.b16 %v492
    %v1071 = vunpack.c.l.b16 %v493
    %v1072 = vunpack.c.h.b16 %v493
    %v1073 = vunpack.c.l.b16 %v494
    %v1074 = vunpack.c.h.b16 %v494
    %v1075 = vunpack.c.l.b16 %v495
    %v1076 = vunpack.c.h.b16 %v495
    %v1077 = vunpack.c.l.b16 %v496
    %v1078 = vunpack.c.h.b16 %v496
    %v1079 = vunpack.c.l.b16 %v497
    %v1080 = vunpack.c.h.b16 %v497
    %v1081 = vunpack.c.l.b16 %v498
    %v1082 = vunpack.c.h.b16 %v498
    %v1083 = vunpack.c.l.b16 %v499
    %v1084 = vunpack.c.h.b16 %v499
    %v1085 = vunpack.c.l.b16 %v500
    %v1086 = vunpack.c.h.b16 %v500
    %v1087 = vunpack.c.l.b16 %v501
    %v1088 = vunpack.c.h.b16 %v501
    %v1089 = vunpack.c.l.b16 %v502
    %v1090 = vunpack.c.h.b16 %v502
    %v1091 = vunpack.c.l.b16 %v503
    %v1092 = vunpack.c.h.b16 %v503
    %v1093 = vunpack.c.l.b16 %v504
    %v1094 = vunpack.c.h.b16 %v504
    %v1095 = vunpack.c.l.b16 %v505
    %v1096 = vunpack.c.h.b16 %v505
    %v1097 = vunpack.c.l.b16 %v506
    %v1098 = vunpack.c.h.b16 %v506
    %v1099 = vunpack.c.l.b16 %v507
    %v1100 = vunpack.c.h.b16 %v507
    %v1101 = vunpack.c.l.b16 %v508
    %v1102 = vunpack.c.h.b16 %v508
    %v1103 = vunpack.c.l.b16 %v509
    %v1104 = vunpack.c.h.b16 %v509
    %v1105 = vunpack.c.l.b16 %v510
    %v1106 = vunpack.c.h.b16 %v510
    %v1107 = vunpack.c.l.b16 %v511
    %v1108 = vunpack.c.h.b16 %v511
    %v1109 = vunpack.c.l.b16 %v512
    %v1110 = vunpack.c.h.b16 %v512
    %v1111 = vunpack.c.l.b16 %v513
    %v1112 = vunpack.c.h.b16 %v513
    %v1113 = vunpack.c.l.b16 %v514
    %v1114 = vunpack.c.h.b16 %v514
    %v1115 = vunpack.c.l.b16 %v515
    %v1116 = vunpack.c.h.b16 %v515
    %v1117 = vunpack.c.l.b16 %v516
    %v1118 = vunpack.c.h.b16 %v516
    %v1119 = vunpack.c.l.b16 %v517
    %v1120 = vunpack.c.h.b16 %v517
    %v1121 = vunpack.c.l.b16 %v518
    %v1122 = vunpack.c.h.b16 %v518
    %v1123 = vunpack.c.l.b16 %v519
    %v1124 = vunpack.c.h.b16 %v519
    %v1125 = vunpack.c.l.b16 %v520
    %v1126 = vunpack.c.h.b16 %v520
    %v1127 = vunpack.c.l.b16 %v521
    %v1128 = vunpack.c.h.b16 %v521
    %v1129 = vunpack.c.l.b16 %v522
    %v1130 = vunpack.c.h.b16 %v522
    %v1131 = vunpack.c.l.b16 %v523
    %v1132 = vunpack.c.h.b16 %v523
    %v1133 = vunpack.c.l.b16 %v524
    %v1134 = vunpack.c.h.b16 %v524
    %v1135 = vunpack.c.l.b16 %v525
    %v1136 = vunpack.c.h.b16 %v525
    %v1137 = vunpack.c.l.b16 %v526
    %v1138 = vunpack.c.h.b16 %v526
    %v1139 = vunpack.c.l.b16 %v527
    %v1140 = vunpack.c.h.b16 %v527
    %v1141 = vunpack.c.l.b16 %v528
    %v1142 = vunpack.c.h.b16 %v528
    %v1143 = vunpack.c.l.b16 %v529
    %v1144 = vunpack.c.h.b16 %v529
    %v1145 = vunpack.c.l.b16 %v530
    %v1146 = vunpack.c.h.b16 %v530
    %v1147 = vunpack.c.l.b16 %v531
    %v1148 = vunpack.c.h.b16 %v531
    %v1149 = vunpack.c.l.b16 %v532
    %v1150 = vunpack.c.h.b16 %v532
    %v1151 = vunpack.c.l.b16 %v533
    %v1152 = vunpack.c.h.b16 %v533
    %v1153 = vunpack.c.l.b16 %v534
    %v1154 = vunpack.c.h.b16 %v534
    %v1155 = vunpack.c.l.b16 %v535
    %v1156 = vunpack.c.h.b16 %v535
    %v1157 = vunpack.c.l.b16 %v536
    %v1158 = vunpack.c.h.b16 %v536
    %v1159 = vunpack.c.l.b16 %v537
    %v1160 = vunpack.c.h.b16 %v537
    %v1161 = vunpack.c.l.b16 %v538
    %v1162 = vunpack.c.h.b16 %v538
    %v1163 = vunpack.c.l.b16 %v539
    %v1164 = vunpack.c.h.b16 %v539
    %v1165 = vunpack.c.l.b16 %v540
    %v1166 = vunpack.c.h.b16 %v540
    %v1167 = vunpack.c.l.b16 %v541
    %v1168 = vunpack.c.h.b16 %v541
    %v1169 = vunpack.c.l.b16 %v542
    %v1170 = vunpack.c.h.b16 %v542
    %v1171 = vunpack.c.l.b16 %v543
    %v1172 = vunpack.c.h.b16 %v543
    %v1173 = vunpack.c.l.b16 %v544
    %v1174 = vunpack.c.h.b16 %v544
    %v1175 = vunpack.c.l.b16 %v545
    %v1176 = vunpack.c.h.b16 %v545
    %v1177 = vunpack.c.l.b16 %v546
    %v1178 = vunpack.c.h.b16 %v546
    %v1179 = vunpack.c.l.b16 %v547
    %v1180 = vunpack.c.h.b16 %v547
    %v1181 = vunpack.c.l.b16 %v548
    %v1182 = vunpack.c.h.b16 %v548
    %v1183 = vunpack.c.l.b16 %v549
    %v1184 = vunpack.c.h.b16 %v549
    %v1185 = vunpack.c.l.b16 %v550
    %v1186 = vunpack.c.h.b16 %v550
    %v1187 = vunpack.c.l.b16 %v551
    %v1188 = vunpack.c.h.b16 %v551
    %v1189 = vunpack.c.l.b16 %v552
    %v1190 = vunpack.c.h.b16 %v552
    %v1191 = vunpack.c.l.b16 %v553
    %v1192 = vunpack.c.h.b16 %v553
    %v1193 = vunpack.c.l.b16 %v554
    %v1194 = vunpack.c.h.b16 %v554
    %v1195 = vunpack.c.l.b16 %v555
    %v1196 = vunpack.c.h.b16 %v555
    %v1197 = vunpack.c.l.b16 %v556
    %v1198 = vunpack.c.h.b16 %v556
    %v1199 = vunpack.c.l.b16 %v557
    %v1200 = vunpack.c.h.b16 %v557
    %v1201 = vunpack.c.l.b16 %v558
    %v1202 = vunpack.c.h.b16 %v558
    %v1203 = vunpack.c.l.b16 %v559
    %v1204 = vunpack.c.h.b16 %v559
    %v1205 = vunpack.c.l.b16 %v560
    %v1206 = vunpack.c.h.b16 %v560
    %v1207 = vunpack.c.l.b16 %v561
    %v1208 = vunpack.c.h.b16 %v561
    %v1209 = vunpack.c.l.b16 %v562
    %v1210 = vunpack.c.h.b16 %v562
    %v1211 = vunpack.c.l.b16 %v563
    %v1212 = vunpack.c.h.b16 %v563
    %v1213 = vunpack.c.l.b16 %v564
    %v1214 = vunpack.c.h.b16 %v564
    %v1215 = vunpack.c.l.b16 %v565
    %v1216 = vunpack.c.h.b16 %v565
    %v1217 = vunpack.c.l.b16 %v566
    %v1218 = vunpack.c.h.b16 %v566
    %v1219 = vunpack.c.l.b16 %v567
    %v1220 = vunpack.c.h.b16 %v567
    %v1221 = vunpack.c.l.b16 %v568
    %v1222 = vunpack.c.h.b16 %v568
    %v1223 = vunpack.c.l.b16 %v569
    %v1224 = vunpack.c.h.b16 %v569
    %v1225 = vunpack.c.l.b16 %v570
    %v1226 = vunpack.c.h.b16 %v570
    %v1227 = vunpack.c.l.b16 %v571
    %v1228 = vunpack.c.h.b16 %v571
    %v1229 = vunpack.c.l.b16 %v572
    %v1230 = vunpack.c.h.b16 %v572
    %v1231 = vunpack.c.l.b16 %v573
    %v1232 = vunpack.c.h.b16 %v573
    %v1233 = vunpack.c.l.b16 %v574
    %v1234 = vunpack.c.h.b16 %v574
    %v1235 = vunpack.c.l.b16 %v575
    %v1236 = vunpack.c.h.b16 %v575
    %v1237 = vunpack.c.l.b16 %v576
    %v1238 = vunpack.c.h.b16 %v576
    %v1239 = vunpack.c.l.b16 %v577
    %v1240 = vunpack.c.h.b16 %v577
    %v1241 = vunpack.c.l.b16 %v578
    %v1242 = vunpack.c.h.b16 %v578
    %v1243 = vunpack.c.l.b16 %v579
    %v1244 = vunpack.c.h.b16 %v579
    %v1245 = vunpack.c.l.b16 %v580
    %v1246 = vunpack.c.h.b16 %v580
    %v1247 = vunpack.c.l.b16 %v581
    %v1248 = vunpack.c.h.b16 %v581
    %v1249 = vunpack.c.l.b16 %v582
    %v1250 = vunpack.c.h.b16 %v582
    %v1251 = vunpack.c.l.b16 %v583
    %v1252 = vunpack.c.h.b16 %v583
    %v1253 = vunpack.c.l.b16 %v584
    %v1254 = vunpack.c.h.b16 %v584
    %v1255 = vunpack.c.l.b16 %v585
    %v1256 = vunpack.c.h.b16 %v585
    %v1257 = vunpack.c.l.b16 %v586
    %v1258 = vunpack.c.h.b16 %v586
    %v1259 = vunpack.c.l.b16 %v587
    %v1260 = vunpack.c.h.b16 %v587
    %v1261 = vunpack.c.l.b16 %v588
    %v1262 = vunpack.c.h.b16 %v588
    %v1263 = vunpack.c.l.b16 %v589
    %v1264 = vunpack.c.h.b16 %v589
    %v1265 = vunpack.c.l.b16 %v590
    %v1266 = vunpack.c.h.b16 %v590
    %v1267 = vunpack.c.l.b16 %v591
    %v1268 = vunpack.c.h.b16 %v591
    %v1269 = vunpack.c.l.b16 %v592
    %v1270 = vunpack.c.h.b16 %v592
    %v1271 = vunpack.c.l.b16 %v593
    %v1272 = vunpack.c.h.b16 %v593
    %v1273 = vunpack.c.l.b16 %v594
    %v1274 = vunpack.c.h.b16 %v594
    %v1275 = vunpack.c.l.b16 %v595
    %v1276 = vunpack.c.h.b16 %v595
    %v1277 = vunpack.c.l.b16 %v596
    %v1278 = vunpack.c.h.b16 %v596
    %v1279 = vunpack.c.l.b16 %v597
    %v1280 = vunpack.c.h.b16 %v597
    %v1281 = vunpack.c.l.b16 %v598
    %v1282 = vunpack.c.h.b16 %v598
    %v1283 = vunpack.c.l.b16 %v599
    %v1284 = vunpack.c.h.b16 %v599
    %v1285 = vunpack.c.l.b16 %v600
    %v1286 = vunpack.c.h.b16 %v600
    %v1287 = vunpack.c.l.b16 %v601
    %v1288 = vunpack.c.h.b16 %v601
    %v1289 = vunpack.c.l.b16 %v602
    %v1290 = vunpack.c.h.b16 %v602
    %v1291 = vunpack.c.l.b16 %v603
    %v1292 = vunpack.c.h.b16 %v603
    %v1293 = vunpack.c.l.b16 %v604
    %v1294 = vunpack.c.h.b16 %v604
    %v1295 = vunpack.c.l.b16 %v605
    %v1296 = vunpack.c.h.b16 %v605
    %v1297 = vunpack.c.l.b16 %v606
    %v1298 = vunpack.c.h.b16 %v606
    %v1299 = vunpack.c.l.b16 %v607
    %v1300 = vunpack.c.h.b16 %v607
    %v1301 = vunpack.c.l.b16 %v608
    %v1302 = vunpack.c.h.b16 %v608
    %v1303 = vunpack.c.l.b16 %v609
    %v1304 = vunpack.c.h.b16 %v609
    %v1305 = vunpack.c.l.b16 %v610
    %v1306 = vunpack.c.h.b16 %v610
    %v1307 = vunpack.c.l.b16 %v611
    %v1308 = vunpack.c.h.b16 %v611
    %v1309 = vunpack.c.l.b16 %v612
    %v1310 = vunpack.c.h.b16 %v612
    %v1311 = vunpack.c.l.b16 %v613
    %v1312 = vunpack.c.h.b16 %v613
    %v1313 = vunpack.c.l.b16 %v614
    %v1314 = vunpack.c.h.b16 %v614
    %v1315 = vunpack.c.l.b16 %v615
    %v1316 = vunpack.c.h.b16 %v615
    %v1317 = vunpack.c.l.b16 %v616
    %v1318 = vunpack.c.h.b16 %v616
    %v1319 = vunpack.c.l.b16 %v617
    %v1320 = vunpack.c.h.b16 %v617
    %v1321 = vunpack.c.l.b16 %v618
    %v1322 = vunpack.c.h.b16 %v618
    %v1323 = vunpack.c.l.b16 %v619
    %v1324 = vunpack.c.h.b16 %v619
    %v1325 = vunpack.c.l.b16 %v620
    %v1326 = vunpack.c.h.b16 %v620
    %v1327 = vunpack.c.l.b16 %v621
    %v1328 = vunpack.c.h.b16 %v621
    %v1329 = vunpack.c.l.b16 %v622
    %v1330 = vunpack.c.h.b16 %v622
    %v1331 = vunpack.c.l.b16 %v623
    %v1332 = vunpack.c.h.b16 %v623
    %v1333 = vunpack.c.l.b16 %v624
    %v1334 = vunpack.c.h.b16 %v624
    %v1335 = vunpack.c.l.b16 %v625
    %v1336 = vunpack.c.h.b16 %v625
    %v1337 = vunpack.c.l.b16 %v626
    %v1338 = vunpack.c.h.b16 %v626
    %v1339 = vunpack.c.l.b16 %v627
    %v1340 = vunpack.c.h.b16 %v627
    %v1341 = vunpack.c.l.b16 %v628
    %v1342 = vunpack.c.h.b16 %v628
    %v1343 = vunpack.c.l.b16 %v629
    %v1344 = vunpack.c.h.b16 %v629
    %v1345 = vunpack.c.l.b16 %v630
    %v1346 = vunpack.c.h.b16 %v630
    %v1347 = vunpack.c.l.b16 %v631
    %v1348 = vunpack.c.h.b16 %v631
    %v1349 = vunpack.c.l.b16 %v632
    %v1350 = vunpack.c.h.b16 %v632
    %v1351 = vunpack.c.l.b16 %v633
    %v1352 = vunpack.c.h.b16 %v633
    %v1353 = vunpack.c.l.b16 %v634
    %v1354 = vunpack.c.h.b16 %v634
    %v1355 = vunpack.c.l.b16 %v635
    %v1356 = vunpack.c.h.b16 %v635
    %v1357 = vunpack.c.l.b16 %v636
    %v1358 = vunpack.c.h.b16 %v636
    %v1359 = vunpack.c.l.b16 %v637
    %v1360 = vunpack.c.h.b16 %v637
    %v1361 = vunpack.c.l.b16 %v638
    %v1362 = vunpack.c.h.b16 %v638
    %v1363 = vunpack.c.l.b16 %v639
    %v1364 = vunpack.c.h.b16 %v639
    %v1365 = vunpack.c.l.b16 %v640
    %v1366 = vunpack.c.h.b16 %v640
    %v1367 = vunpack.c.l.b16 %v641
    %v1368 = vunpack.c.h.b16 %v641
    %v1369 = vunpack.c.l.b16 %v642
    %v1370 = vunpack.c.h.b16 %v642
    %v1371 = vunpack.c.l.b16 %v643
    %v1372 = vunpack.c.h.b16 %v643
    %v1373 = vunpack.c.l.b16 %v644
    %v1374 = vunpack.c.h.b16 %v644
    %v1375 = vunpack.c.l.b16 %v645
    %v1376 = vunpack.c.h.b16 %v645
    %v1377 = vunpack.c.l.b16 %v646
    %v1378 = vunpack.c.h.b16 %v646
    %v1379 = vunpack.c.l.b16 %v647
    %v1380 = vunpack.c.h.b16 %v647
    %v1381 = vunpack.c.l.b16 %v648
    %v1382 = vunpack.c.h.b16 %v648
    %v1383 = vunpack.c.l.b16 %v649
    %v1384 = vunpack.c.h.b16 %v649
    %v1385 = vunpack.c.l.b16 %v650
    %v1386 = vunpack.c.h.b16 %v650
    %v1387 = vunpack.c.l.b16 %v651
    %v1388 = vunpack.c.h.b16 %v651
    %v1389 = vunpack.c.l.b16 %v652
    %v1390 = vunpack.c.h.b16 %v652
    %v1391 = vunpack.c.l.b16 %v653
    %v1392 = vunpack.c.h.b16 %v653
    %v1393 = vunpack.c.l.b16 %v654
    %v1394 = vunpack.c.h.b16 %v654
    %v1395 = vunpack.c.l.b16 %v655
    %v1396 = vunpack.c.h.b16 %v655
    %v1397 = vunpack.c.l.b16 %v656
    %v1398 = vunpack.c.h.b16 %v656
    %v1399 = vunpack.c.l.b16 %v657
    %v1400 = vunpack.c.h.b16 %v657
    %v1401 = vunpack.c.l.b16 %v658
    %v1402 = vunpack.c.h.b16 %v658
    %v1403 = vunpack.c.l.b16 %v659
    %v1404 = vunpack.c.h.b16 %v659
    %v1405 = vunpack.c.l.b16 %v660
    %v1406 = vunpack.c.h.b16 %v660
    %v1407 = vunpack.c.l.b16 %v661
    %v1408 = vunpack.c.h.b16 %v661
    %v1409 = vunpack.c.l.b16 %v662
    %v1410 = vunpack.c.h.b16 %v662
    %v1411 = vunpack.c.l.b16 %v663
    %v1412 = vunpack.c.h.b16 %v663
    %v1413 = vunpack.c.l.b16 %v664
    %v1414 = vunpack.c.h.b16 %v664
    %v1415 = vunpack.c.l.b16 %v665
    %v1416 = vunpack.c.h.b16 %v665
    %v1417 = vunpack.c.l.b16 %v666
    %v1418 = vunpack.c.h.b16 %v666
    %v1419 = vunpack.c.l.b16 %v667
    %v1420 = vunpack.c.h.b16 %v667
    %v1421 = vunpack.c.l.b16 %v668
    %v1422 = vunpack.c.h.b16 %v668
    %v1423 = vunpack.c.l.b16 %v669
    %v1424 = vunpack.c.h.b16 %v669
    %v1425 = vunpack.c.l.b16 %v670
    %v1426 = vunpack.c.h.b16 %v670
    %v1427 = vunpack.c.l.b16 %v671
    %v1428 = vunpack.c.h.b16 %v671
    %v1429 = vunpack.c.l.b16 %v672
    %v1430 = vunpack.c.h.b16 %v672
    %v1431 = vunpack.c.l.b16 %v673
    %v1432 = vunpack.c.h.b16 %v673
    %v1433 = vunpack.c.l.b16 %v674
    %v1434 = vunpack.c.h.b16 %v674
    %v1435 = vunpack.c.l.b16 %v675
    %v1436 = vunpack.c.h.b16 %v675
    %v1437 = vunpack.c.l.b16 %v676
    %v1438 = vunpack.c.h.b16 %v676
    %v1439 = vunpack.c.l.b16 %v677
    %v1440 = vunpack.c.h.b16 %v677
    %v1441 = vunpack.c.l.b16 %v678
    %v1442 = vunpack.c.h.b16 %v678
    %v1443 = vunpack.c.l.b16 %v679
    %v1444 = vunpack.c.h.b16 %v679
    %v1445 = vunpack.c.l.b16 %v680
    %v1446 = vunpack.c.h.b16 %v680
    %v1447 = vunpack.c.l.b16 %v681
    %v1448 = vunpack.c.h.b16 %v681
    %v1449 = vunpack.c.l.b16 %v682
    %v1450 = vunpack.c.h.b16 %v682
    %v1451 = vunpack.c.l.b16 %v683
    %v1452 = vunpack.c.h.b16 %v683
    %v1453 = vunpack.c.l.b16 %v684
    %v1454 = vunpack.c.h.b16 %v684
    %v1455 = vunpack.c.l.b16 %v685
    %v1456 = vunpack.c.h.b16 %v685
    %v1457 = vunpack.c.l.b16 %v686
    %v1458 = vunpack.c.h.b16 %v686
    %v1459 = vunpack.c.l.b16 %v687
    %v1460 = vunpack.c.h.b16 %v687
    %v1461 = vunpack.c.l.b16 %v688
    %v1462 = vunpack.c.h.b16 %v688
    %v1463 = vunpack.c.l.b16 %v689
    %v1464 = vunpack.c.h.b16 %v689
    %v1465 = vunpack.c.l.b16 %v690
    %v1466 = vunpack.c.h.b16 %v690
    %v1467 = vunpack.c.l.b16 %v691
    %v1468 = vunpack.c.h.b16 %v691
    %v1469 = vunpack.c.l.b16 %v692
    %v1470 = vunpack.c.h.b16 %v692
    %v1471 = vunpack.c.l.b16 %v693
    %v1472 = vunpack.c.h.b16 %v693
    %v1473 = vunpack.c.l.b16 %v694
    %v1474 = vunpack.c.h.b16 %v694
    %v1475 = vunpack.c.l.b16 %v695
    %v1476 = vunpack.c.h.b16 %v695
    %v1477 = vunpack.c.l.b16 %v696
    %v1478 = vunpack.c.h.b16 %v696
    %v1479 = vunpack.c.l.b16 %v697
    %v1480 = vunpack.c.h.b16 %v697
    %v1481 = vunpack.c.l.b16 %v698
    %v1482 = vunpack.c.h.b16 %v698
    %v1483 = vunpack.c.l.b16 %v699
    %v1484 = vunpack.c.h.b16 %v699
    %v1485 = vunpack.c.l.b16 %v700
    %v1486 = vunpack.c.h.b16 %v700
    %v1487 = vunpack.c.l.b16 %v701
    %v1488 = vunpack.c.h.b16 %v701
    %v1489 = vunpack.c.l.b16 %v702
    %v1490 = vunpack.c.h.b16 %v702
    %v1491 = vunpack.c.l.b16 %v703
    %v1492 = vunpack.c.h.b16 %v703
    %v1493 = vunpack.c.l.b16 %v704
    %v1494 = vunpack.c.h.b16 %v704
    %v1495 = vpack.c.b16 %v987, %v983
    %v1496 = vpack.c.b16 %v988, %v984
    %v1497 = vpack.c.b16 %v989, %v985
    %v1498 = vpack.c.b16 %v990, %v986
    %v1499 = vpack.c.b16 %v995, %v991
    %v1500 = vpack.c.b16 %v996, %v992
    %v1501 = vpack.c.b16 %v997, %v993
    %v1502 = vpack.c.b16 %v998, %v994
    %v1503 = vpack.c.b16 %v1003, %v999
    %v1504 = vpack.c.b16 %v1004, %v1000
    %v1505 = vpack.c.b16 %v1005, %v1001
    %v1506 = vpack.c.b16 %v1006, %v1002
    %v1507 = vpack.c.b16 %v1011, %v1007
    %v1508 = vpack.c.b16 %v1012, %v1008
    %v1509 = vpack.c.b16 %v1013, %v1009
    %v1510 = vpack.c.b16 %v1014, %v1010
    %v1511 = vpack.c.b16 %v1019, %v1015
    %v1512 = vpack.c.b16 %v1020, %v1016
    %v1513 = vpack.c.b16 %v1021, %v1017
    %v1514 = vpack.c.b16 %v1022, %v1018
    %v1515 = vpack.c.b16 %v1027, %v1023
    %v1516 = vpack.c.b16 %v1028, %v1024
    %v1517 = vpack.c.b16 %v1029, %v1025
    %v1518 = vpack.c.b16 %v1030, %v1026
    %v1519 = vpack.c.b16 %v1035, %v1031
    %v1520 = vpack.c.b16 %v1036, %v1032
    %v1521 = vpack.c.b16 %v1037, %v1033
    %v1522 = vpack.c.b16 %v1038, %v1034
    %v1523 = vpack.c.b16 %v1043, %v1039
    %v1524 = vpack.c.b16 %v1044, %v1040
    %v1525 = vpack.c.b16 %v1045, %v1041
    %v1526 = vpack.c.b16 %v1046, %v1042
    %v1527 = vpack.c.b16 %v1051, %v1047
    %v1528 = vpack.c.b16 %v1052, %v1048
    %v1529 = vpack.c.b16 %v1053, %v1049
    %v1530 = vpack.c.b16 %v1054, %v1050
    %v1531 = vpack.c.b16 %v1059, %v1055
    %v1532 = vpack.c.b16 %v1060, %v1056
    %v1533 = vpack.c.b16 %v1061, %v1057
    %v1534 = vpack.c.b16 %v1062, %v1058
    %v1535 = vpack.c.b16 %v1067, %v1063
    %v1536 = vpack.c.b16 %v1068, %v1064
    %v1537 = vpack.c.b16 %v1069, %v1065
    %v1538 = vpack.c.b16 %v1070, %v1066
    %v1539 = vpack.c.b16 %v1075, %v1071
    %v1540 = vpack.c.b16 %v1076, %v1072
    %v1541 = vpack.c.b16 %v1077, %v1073
    %v1542 = vpack.c.b16 %v1078, %v1074
    %v1543 = vpack.c.b16 %v1083, %v1079
    %v1544 = vpack.c.b16 %v1084, %v1080
    %v1545 = vpack.c.b16 %v1085, %v1081
    %v1546 = vpack.c.b16 %v1086, %v1082
    %v1547 = vpack.c.b16 %v1091, %v1087
    %v1548 = vpack.c.b16 %v1092, %v1088
    %v1549 = vpack.c.b16 %v1093, %v1089
    %v1550 = vpack.c.b16 %v1094, %v1090
    %v1551 = vpack.c.b16 %v1099, %v1095
    %v1552 = vpack.c.b16 %v1100, %v1096
    %v1553 = vpack.c.b16 %v1101, %v1097
    %v1554 = vpack.c.b16 %v1102, %v1098
    %v1555 = vpack.c.b16 %v1107, %v1103
    %v1556 = vpack.c.b16 %v1108, %v1104
    %v1557 = vpack.c.b16 %v1109, %v1105
    %v1558 = vpack.c.b16 %v1110, %v1106
    %v1559 = vpack.c.b16 %v1115, %v1111
    %v1560 = vpack.c.b16 %v1116, %v1112
    %v1561 = vpack.c.b16 %v1117, %v1113
    %v1562 = vpack.c.b16 %v1118, %v1114
    %v1563 = vpack.c.b16 %v1123, %v1119
    %v1564 = vpack.c.b16 %v1124, %v1120
    %v1565 = vpack.c.b16 %v1125, %v1121
    %v1566 = vpack.c.b16 %v1126, %v1122
    %v1567 = vpack.c.b16 %v1131, %v1127
    %v1568 = vpack.c.b16 %v1132, %v1128
    %v1569 = vpack.c.b16 %v1133, %v1129
    %v1570 = vpack.c.b16 %v1134, %v1130
    %v1571 = vpack.c.b16 %v1139, %v1135
    %v1572 = vpack.c.b16 %v1140, %v1136
    %v1573 = vpack.c.b16 %v1141, %v1137
    %v1574 = vpack.c.b16 %v1142, %v1138
    %v1575 = vpack.c.b16 %v1147, %v1143
    %v1576 = vpack.c.b16 %v1148, %v1144
    %v1577 = vpack.c.b16 %v1149, %v1145
    %v1578 = vpack.c.b16 %v1150, %v1146
    %v1579 = vpack.c.b16 %v1155, %v1151
    %v1580 = vpack.c.b16 %v1156, %v1152
    %v1581 = vpack.c.b16 %v1157, %v1153
    %v1582 = vpack.c.b16 %v1158, %v1154
    %v1583 = vpack.c.b16 %v1163, %v1159
    %v1584 = vpack.c.b16 %v1164, %v1160
    %v1585 = vpack.c.b16 %v1165, %v1161
    %v1586 = vpack.c.b16 %v1166, %v1162
    %v1587 = vpack.c.b16 %v1171, %v1167
    %v1588 = vpack.c.b16 %v1172, %v1168
    %v1589 = vpack.c.b16 %v1173, %v1169
    %v1590 = vpack.c.b16 %v1174, %v1170
    %v1591 = vpack.c.b16 %v1179, %v1175
    %v1592 = vpack.c.b16 %v1180, %v1176
    %v1593 = vpack.c.b16 %v1181, %v1177
    %v1594 = vpack.c.b16 %v1182, %v1178
    %v1595 = vpack.c.b16 %v1187, %v1183
    %v1596 = vpack.c.b16 %v1188, %v1184
    %v1597 = vpack.c.b16 %v1189, %v1185
    %v1598 = vpack.c.b16 %v1190, %v1186
    %v1599 = vpack.c.b16 %v1195, %v1191
    %v1600 = vpack.c.b16 %v1196, %v1192
    %v1601 = vpack.c.b16 %v1197, %v1193
    %v1602 = vpack.c.b16 %v1198, %v1194
    %v1603 = vpack.c.b16 %v1203, %v1199
    %v1604 = vpack.c.b16 %v1204, %v1200
    %v1605 = vpack.c.b16 %v1205, %v1201
    %v1606 = vpack.c.b16 %v1206, %v1202
    %v1607 = vpack.c.b16 %v1211, %v1207
    %v1608 = vpack.c.b16 %v1212, %v1208
    %v1609 = vpack.c.b16 %v1213, %v1209
    %v1610 = vpack.c.b16 %v1214, %v1210
    %v1611 = vpack.c.b16 %v1219, %v1215
    %v1612 = vpack.c.b16 %v1220, %v1216
    %v1613 = vpack.c.b16 %v1221, %v1217
    %v1614 = vpack.c.b16 %v1222, %v1218
    %v1615 = vpack.c.b16 %v1227, %v1223
    %v1616 = vpack.c.b16 %v1228, %v1224
    %v1617 = vpack.c.b16 %v1229, %v1225
    %v1618 = vpack.c.b16 %v1230, %v1226
    %v1619 = vpack.c.b16 %v1235, %v1231
    %v1620 = vpack.c.b16 %v1236, %v1232
    %v1621 = vpack.c.b16 %v1237, %v1233
    %v1622 = vpack.c.b16 %v1238, %v1234
    %v1623 = vpack.c.b16 %v1243, %v1239
    %v1624 = vpack.c.b16 %v1244, %v1240
    %v1625 = vpack.c.b16 %v1245, %v1241
    %v1626 = vpack.c.b16 %v1246, %v1242
    %v1627 = vpack.c.b16 %v1251, %v1247
    %v1628 = vpack.c.b16 %v1252, %v1248
    %v1629 = vpack.c.b16 %v1253, %v1249
    %v1630 = vpack.c.b16 %v1254, %v1250
    %v1631 = vpack.c.b16 %v1259, %v1255
    %v1632 = vpack.c.b16 %v1260, %v1256
    %v1633 = vpack.c.b16 %v1261, %v1257
    %v1634 = vpack.c.b16 %v1262, %v1258
    %v1635 = vpack.c.b16 %v1267, %v1263
    %v1636 = vpack.c.b16 %v1268, %v1264
    %v1637 = vpack.c.b16 %v1269, %v1265
    %v1638 = vpack.c.b16 %v1270, %v1266
    %v1639 = vpack.c.b16 %v1275, %v1271
    %v1640 = vpack.c.b16 %v1276, %v1272
    %v1641 = vpack.c.b16 %v1277, %v1273
    %v1642 = vpack.c.b16 %v1278, %v1274
    %v1643 = vpack.c.b16 %v1283, %v1279
    %v1644 = vpack.c.b16 %v1284, %v1280
    %v1645 = vpack.c.b16 %v1285, %v1281
    %v1646 = vpack.c.b16 %v1286, %v1282
    %v1647 = vpack.c.b16 %v1291, %v1287
    %v1648 = vpack.c.b16 %v1292, %v1288
    %v1649 = vpack.c.b16 %v1293, %v1289
    %v1650 = vpack.c.b16 %v1294, %v1290
    %v1651 = vpack.c.b16 %v1299, %v1295
    %v1652 = vpack.c.b16 %v1300, %v1296
    %v1653 = vpack.c.b16 %v1301, %v1297
    %v1654 = vpack.c.b16 %v1302, %v1298
    %v1655 = vpack.c.b16 %v1307, %v1303
    %v1656 = vpack.c.b16 %v1308, %v1304
    %v1657 = vpack.c.b16 %v1309, %v1305
    %v1658 = vpack.c.b16 %v1310, %v1306
    %v1659 = vpack.c.b16 %v1315, %v1311
    %v1660 = vpack.c.b16 %v1316, %v1312
    %v1661 = vpack.c.b16 %v1317, %v1313
    %v1662 = vpack.c.b16 %v1318, %v1314
    %v1663 = vpack.c.b16 %v1323, %v1319
    %v1664 = vpack.c.b16 %v1324, %v1320
    %v1665 = vpack.c.b16 %v1325, %v1321
    %v1666 = vpack.c.b16 %v1326, %v1322
    %v1667 = vpack.c.b16 %v1331, %v1327
    %v1668 = vpack.c.b16 %v1332, %v1328
    %v1669 = vpack.c.b16 %v1333, %v1329
    %v1670 = vpack.c.b16 %v1334, %v1330
    %v1671 = vpack.c.b16 %v1339, %v1335
    %v1672 = vpack.c.b16 %v1340, %v1336
    %v1673 = vpack.c.b16 %v1341, %v1337
    %v1674 = vpack.c.b16 %v1342, %v1338
    %v1675 = vpack.c.b16 %v1347, %v1343
    %v1676 = vpack.c.b16 %v1348, %v1344
    %v1677 = vpack.c.b16 %v1349, %v1345
    %v1678 = vpack.c.b16 %v1350, %v1346
    %v1679 = vpack.c.b16 %v1355, %v1351
    %v1680 = vpack.c.b16 %v1356, %v1352
    %v1681 = vpack.c.b16 %v1357, %v1353
    %v1682 = vpack.c.b16 %v1358, %v1354
    %v1683 = vpack.c.b16 %v1363, %v1359
    %v1684 = vpack.c.b16 %v1364, %v1360
    %v1685 = vpack.c.b16 %v1365, %v1361
    %v1686 = vpack.c.b16 %v1366, %v1362
    %v1687 = vpack.c.b16 %v1371, %v1367
    %v1688 = vpack.c.b16 %v1372, %v1368
    %v1689 = vpack.c.b16 %v1373, %v1369
    %v1690 = vpack.c.b16 %v1374, %v1370
    %v1691 = vpack.c.b16 %v1379, %v1375
    %v1692 = vpack.c.b16 %v1380, %v1376
    %v1693 = vpack.c.b16 %v1381, %v1377
    %v1694 = vpack.c.b16 %v1382, %v1378
    %v1695 = vpack.c.b16 %v1387, %v1383
    %v1696 = vpack.c.b16 %v1388, %v1384
    %v1697 = vpack.c.b16 %v1389, %v1385
    %v1698 = vpack.c.b16 %v1390, %v1386
    %v1699 = vpack.c.b16 %v1395, %v1391
    %v1700 = vpack.c.b16 %v1396, %v1392
    %v1701 = vpack.c.b16 %v1397, %v1393
    %v1702 = vpack.c.b16 %v1398, %v1394
    %v1703 = vpack.c.b16 %v1403, %v1399
    %v1704 = vpack.c.b16 %v1404, %v1400
    %v1705 = vpack.c.b16 %v1405, %v1401
    %v1706 = vpack.c.b16 %v1406, %v1402
    %v1707 = vpack.c.b16 %v1411, %v1407
    %v1708 = vpack.c.b16 %v1412, %v1408
    %v1709 = vpack.c.b16 %v1413, %v1409
    %v1710 = vpack.c.b16 %v1414, %v1410
    %v1711 = vpack.c.b16 %v1419, %v1415
    %v1712 = vpack.c.b16 %v1420, %v1416
    %v1713 = vpack.c.b16 %v1421, %v1417
    %v1714 = vpack.c.b16 %v1422, %v1418
    %v1715 = vpack.c.b16 %v1427, %v1423
    %v1716 = vpack.c.b16 %v1428, %v1424
    %v1717 = vpack.c.b16 %v1429, %v1425
    %v1718 = vpack.c.b16 %v1430, %v1426
    %v1719 = vpack.c.b16 %v1435, %v1431
    %v1720 = vpack.c.b16 %v1436, %v1432
    %v1721 = vpack.c.b16 %v1437, %v1433
    %v1722 = vpack.c.b16 %v1438, %v1434
    %v1723 = vpack.c.b16 %v1443, %v1439
    %v1724 = vpack.c.b16 %v1444, %v1440
    %v1725 = vpack.c.b16 %v1445, %v1441
    %v1726 = vpack.c.b16 %v1446, %v1442
    %v1727 = vpack.c.b16 %v1451, %v1447
    %v1728 = vpack.c.b16 %v1452, %v1448
    %v1729 = vpack.c.b16 %v1453, %v1449
    %v1730 = vpack.c.b16 %v1454, %v1450
    %v1731 = vpack.c.b16 %v1459, %v1455
    %v1732 = vpack.c.b16 %v1460, %v1456
    %v1733 = vpack.c.b16 %v1461, %v1457
    %v1734 = vpack.c.b16 %v1462, %v1458
    %v1735 = vpack.c.b16 %v1467, %v1463
    %v1736 = vpack.c.b16 %v1468, %v1464
    %v1737 = vpack.c.b16 %v1469, %v1465
    %v1738 = vpack.c.b16 %v1470, %v1466
    %v1739 = vpack.c.b16 %v1475, %v1471
    %v1740 = vpack.c.b16 %v1476, %v1472
    %v1741 = vpack.c.b16 %v1477, %v1473
    %v1742 = vpack.c.b16 %v1478, %v1474
    %v1743 = vpack.c.b16 %v1483, %v1479
    %v1744 = vpack.c.b16 %v1484, %v1480
    %v1745 = vpack.c.b16 %v1485, %v1481
    %v1746 = vpack.c.b16 %v1486, %v1482
    %v1747 = vpack.c.b16 %v1491, %v1487
    %v1748 = vpack.c.b16 %v1492, %v1488
    %v1749 = vpack.c.b16 %v1493, %v1489
    %v1750 = vpack.c.b16 %v1494, %v1490
    %2007 = vmatprep.subr.bf16.mxu0 %v1524
    %2008 = vmatpush1.bf16.msra.mxu0 %v1523
    %2009 = vmatprep.subr.bf16.mxu0 %v1520
    %2010 = vmatpush1.bf16.msra.mxu0 %v1519
    %2011 = vmatprep.subr.bf16.mxu0 %v1516
    %2012 = vmatpush1.bf16.msra.mxu0 %v1515
    %2013 = vmatprep.subr.bf16.mxu0 %v1512
    %2014 = vmatpush1.bf16.msra.mxu0 %v1511
    %2015 = vmatprep.subr.bf16.mxu0 %v1508
    %2016 = vmatpush1.bf16.msra.mxu0 %v1507
    %2017 = vmatprep.subr.bf16.mxu0 %v1504
    %2018 = vmatpush1.bf16.msra.mxu0 %v1503
    %2019 = vmatprep.subr.bf16.mxu0 %v1500
    %2020 = vmatpush1.bf16.msra.mxu0 %v1499
    %2021 = vmatprep.subr.bf16.mxu0 %v1496
    %2022 = vmatpush1.bf16.msra.mxu0 %v1495
    %2023 = vmatprep.subr.bf16.mxu0 %v1556
    %2024 = vmatpush2.bf16.msra.mxu0 %v1555
    %2025 = vmatprep.subr.bf16.mxu0 %v1552
    %2026 = vmatpush2.bf16.msra.mxu0 %v1551
    %2027 = vmatprep.subr.bf16.mxu0 %v1548
    %2028 = vmatpush2.bf16.msra.mxu0 %v1547
    %2029 = vmatprep.subr.bf16.mxu0 %v1544
    %2030 = vmatpush2.bf16.msra.mxu0 %v1543
    %2031 = vmatprep.subr.bf16.mxu0 %v1540
    %2032 = vmatpush2.bf16.msra.mxu0 %v1539
    %2033 = vmatprep.subr.bf16.mxu0 %v1536
    %2034 = vmatpush2.bf16.msra.mxu0 %v1535
    %2035 = vmatprep.subr.bf16.mxu0 %v1532
    %2036 = vmatpush2.bf16.msra.mxu0 %v1531
    %2037 = vmatprep.subr.bf16.mxu0 %v1528
    %2038 = vmatpush2.bf16.msra.mxu0 %v1527
    %2039 = vmatprep.mubr.bf16.mxu0 %v442
    %2040 = vmatmul.mubr.bf16.gmra.mxu0 %v441
    %v2041 = vpop.f32.mrf.mxu0
    %v2042 = vadd.f32 %v710, %v2041
    %v2043 = vpop.f32.mrf.mxu0
    %v2044 = vadd.f32 %v714, %v2043
    %v2045 = vpop.f32.mrf.mxu0
    %v2046 = vpop.f32.mrf.mxu0
    %2047 = vdwg.mxu0
    %2048 = vmatprep.subr.bf16.mxu0 %v1588
    %2049 = vmatpush1.bf16.msra.mxu0 %v1587
    %2050 = vmatprep.subr.bf16.mxu0 %v1584
    %2051 = vmatpush1.bf16.msra.mxu0 %v1583
    %2052 = vmatprep.subr.bf16.mxu0 %v1580
    %2053 = vmatpush1.bf16.msra.mxu0 %v1579
    %2054 = vmatprep.subr.bf16.mxu0 %v1576
    %2055 = vmatpush1.bf16.msra.mxu0 %v1575
    %2056 = vmatprep.subr.bf16.mxu0 %v1572
    %2057 = vmatpush1.bf16.msra.mxu0 %v1571
    %2058 = vmatprep.subr.bf16.mxu0 %v1568
    %2059 = vmatpush1.bf16.msra.mxu0 %v1567
    %2060 = vmatprep.subr.bf16.mxu0 %v1564
    %2061 = vmatpush1.bf16.msra.mxu0 %v1563
    %2062 = vmatprep.subr.bf16.mxu0 %v1560
    %2063 = vmatpush1.bf16.msra.mxu0 %v1559
    %2064 = vmatprep.subr.bf16.mxu0 %v1620
    %2065 = vmatpush2.bf16.msra.mxu0 %v1619
    %2066 = vmatprep.subr.bf16.mxu0 %v1616
    %2067 = vmatpush2.bf16.msra.mxu0 %v1615
    %2068 = vmatprep.subr.bf16.mxu0 %v1612
    %2069 = vmatpush2.bf16.msra.mxu0 %v1611
    %2070 = vmatprep.subr.bf16.mxu0 %v1608
    %2071 = vmatpush2.bf16.msra.mxu0 %v1607
    %2072 = vmatprep.subr.bf16.mxu0 %v1604
    %2073 = vmatpush2.bf16.msra.mxu0 %v1603
    %2074 = vmatprep.subr.bf16.mxu0 %v1600
    %2075 = vmatpush2.bf16.msra.mxu0 %v1599
    %2076 = vmatprep.subr.bf16.mxu0 %v1596
    %2077 = vmatpush2.bf16.msra.mxu0 %v1595
    %2078 = vmatprep.subr.bf16.mxu0 %v1592
    %2079 = vmatpush2.bf16.msra.mxu0 %v1591
    %2080 = vmatprep.mubr.bf16.mxu0 %v444
    %2081 = vmatmul.mubr.bf16.gmra.mxu0 %v443
    %v2082 = vpop.f32.mrf.mxu0
    %v2083 = vadd.f32 %v2042, %v2082
    %v2084 = vpop.f32.mrf.mxu0
    %v2085 = vadd.f32 %v2044, %v2084
    %v2086 = vpop.f32.mrf.mxu0
    %v2087 = vpop.f32.mrf.mxu0
    %2088 = vdwg.mxu0
    %2089 = vmatprep.subr.bf16.mxu0 %v1652
    %2090 = vmatpush1.bf16.msra.mxu0 %v1651
    %2091 = vmatprep.subr.bf16.mxu0 %v1648
    %2092 = vmatpush1.bf16.msra.mxu0 %v1647
    %2093 = vmatprep.subr.bf16.mxu0 %v1644
    %2094 = vmatpush1.bf16.msra.mxu0 %v1643
    %2095 = vmatprep.subr.bf16.mxu0 %v1640
    %2096 = vmatpush1.bf16.msra.mxu0 %v1639
    %2097 = vmatprep.subr.bf16.mxu0 %v1636
    %2098 = vmatpush1.bf16.msra.mxu0 %v1635
    %2099 = vmatprep.subr.bf16.mxu0 %v1632
    %2100 = vmatpush1.bf16.msra.mxu0 %v1631
    %2101 = vmatprep.subr.bf16.mxu0 %v1628
    %2102 = vmatpush1.bf16.msra.mxu0 %v1627
    %2103 = vmatprep.subr.bf16.mxu0 %v1624
    %2104 = vmatpush1.bf16.msra.mxu0 %v1623
    %2105 = vmatprep.subr.bf16.mxu0 %v1684
    %2106 = vmatpush2.bf16.msra.mxu0 %v1683
    %2107 = vmatprep.subr.bf16.mxu0 %v1680
    %2108 = vmatpush2.bf16.msra.mxu0 %v1679
    %2109 = vmatprep.subr.bf16.mxu0 %v1676
    %2110 = vmatpush2.bf16.msra.mxu0 %v1675
    %2111 = vmatprep.subr.bf16.mxu0 %v1672
    %2112 = vmatpush2.bf16.msra.mxu0 %v1671
    %2113 = vmatprep.subr.bf16.mxu0 %v1668
    %2114 = vmatpush2.bf16.msra.mxu0 %v1667
    %2115 = vmatprep.subr.bf16.mxu0 %v1664
    %2116 = vmatpush2.bf16.msra.mxu0 %v1663
    %2117 = vmatprep.subr.bf16.mxu0 %v1660
    %2118 = vmatpush2.bf16.msra.mxu0 %v1659
    %2119 = vmatprep.subr.bf16.mxu0 %v1656
    %2120 = vmatpush2.bf16.msra.mxu0 %v1655
    %2121 = vmatprep.mubr.bf16.mxu0 %v446
    %2122 = vmatmul.mubr.bf16.gmra.mxu0 %v445
    %v2123 = vpop.f32.mrf.mxu0
    %v2124 = vadd.f32 %v2083, %v2123
    %v2125 = vpop.f32.mrf.mxu0
    %v2126 = vadd.f32 %v2085, %v2125
    %v2127 = vpop.f32.mrf.mxu0
    %v2128 = vpop.f32.mrf.mxu0
    %2129 = vdwg.mxu0
    %2130 = vmatprep.subr.bf16.mxu0 %v1716
    %2131 = vmatpush1.bf16.msra.mxu0 %v1715
    %2132 = vmatprep.subr.bf16.mxu0 %v1712
    %2133 = vmatpush1.bf16.msra.mxu0 %v1711
    %2134 = vmatprep.subr.bf16.mxu0 %v1708
    %2135 = vmatpush1.bf16.msra.mxu0 %v1707
    %2136 = vmatprep.subr.bf16.mxu0 %v1704
    %2137 = vmatpush1.bf16.msra.mxu0 %v1703
    %2138 = vmatprep.subr.bf16.mxu0 %v1700
    %2139 = vmatpush1.bf16.msra.mxu0 %v1699
    %2140 = vmatprep.subr.bf16.mxu0 %v1696
    %2141 = vmatpush1.bf16.msra.mxu0 %v1695
    %2142 = vmatprep.subr.bf16.mxu0 %v1692
    %2143 = vmatpush1.bf16.msra.mxu0 %v1691
    %2144 = vmatprep.subr.bf16.mxu0 %v1688
    %2145 = vmatpush1.bf16.msra.mxu0 %v1687
    %2146 = vmatprep.subr.bf16.mxu0 %v1748
    %2147 = vmatpush2.bf16.msra.mxu0 %v1747
    %2148 = vmatprep.subr.bf16.mxu0 %v1744
    %2149 = vmatpush2.bf16.msra.mxu0 %v1743
    %2150 = vmatprep.subr.bf16.mxu0 %v1740
    %2151 = vmatpush2.bf16.msra.mxu0 %v1739
    %2152 = vmatprep.subr.bf16.mxu0 %v1736
    %2153 = vmatpush2.bf16.msra.mxu0 %v1735
    %2154 = vmatprep.subr.bf16.mxu0 %v1732
    %2155 = vmatpush2.bf16.msra.mxu0 %v1731
    %2156 = vmatprep.subr.bf16.mxu0 %v1728
    %2157 = vmatpush2.bf16.msra.mxu0 %v1727
    %2158 = vmatprep.subr.bf16.mxu0 %v1724
    %2159 = vmatpush2.bf16.msra.mxu0 %v1723
    %2160 = vmatprep.subr.bf16.mxu0 %v1720
    %2161 = vmatpush2.bf16.msra.mxu0 %v1719
    %2162 = vmatprep.mubr.bf16.mxu0 %v448
    %2163 = vmatmul.mubr.bf16.gmra.mxu0 %v447
    %v2164 = vpop.f32.mrf.mxu0
    %v2165 = vadd.f32 %v2124, %v2164
    %v2166 = vpop.f32.mrf.mxu0
    %v2167 = vadd.f32 %v2126, %v2166
    %v2168 = vpop.f32.mrf.mxu0
    %v2169 = vpop.f32.mrf.mxu0
    %2170 = vdwg.mxu0
    %2171 = vmatprep.subr.bf16.mxu0 %v1526
    %2172 = vmatpush1.bf16.msra.mxu0 %v1525
    %2173 = vmatprep.subr.bf16.mxu0 %v1522
    %2174 = vmatpush1.bf16.msra.mxu0 %v1521
    %2175 = vmatprep.subr.bf16.mxu0 %v1518
    %2176 = vmatpush1.bf16.msra.mxu0 %v1517
    %2177 = vmatprep.subr.bf16.mxu0 %v1514
    %2178 = vmatpush1.bf16.msra.mxu0 %v1513
    %2179 = vmatprep.subr.bf16.mxu0 %v1510
    %2180 = vmatpush1.bf16.msra.mxu0 %v1509
    %2181 = vmatprep.subr.bf16.mxu0 %v1506
    %2182 = vmatpush1.bf16.msra.mxu0 %v1505
    %2183 = vmatprep.subr.bf16.mxu0 %v1502
    %2184 = vmatpush1.bf16.msra.mxu0 %v1501
    %2185 = vmatprep.subr.bf16.mxu0 %v1498
    %2186 = vmatpush1.bf16.msra.mxu0 %v1497
    %2187 = vmatprep.subr.bf16.mxu0 %v1558
    %2188 = vmatpush2.bf16.msra.mxu0 %v1557
    %2189 = vmatprep.subr.bf16.mxu0 %v1554
    %2190 = vmatpush2.bf16.msra.mxu0 %v1553
    %2191 = vmatprep.subr.bf16.mxu0 %v1550
    %2192 = vmatpush2.bf16.msra.mxu0 %v1549
    %2193 = vmatprep.subr.bf16.mxu0 %v1546
    %2194 = vmatpush2.bf16.msra.mxu0 %v1545
    %2195 = vmatprep.subr.bf16.mxu0 %v1542
    %2196 = vmatpush2.bf16.msra.mxu0 %v1541
    %2197 = vmatprep.subr.bf16.mxu0 %v1538
    %2198 = vmatpush2.bf16.msra.mxu0 %v1537
    %2199 = vmatprep.subr.bf16.mxu0 %v1534
    %2200 = vmatpush2.bf16.msra.mxu0 %v1533
    %2201 = vmatprep.subr.bf16.mxu0 %v1530
    %2202 = vmatpush2.bf16.msra.mxu0 %v1529
    %2203 = vmatprep.mubr.bf16.mxu0 %v442
    %2204 = vmatmul.mubr.bf16.gmra.mxu0 %v441
    %v2205 = vpop.f32.mrf.mxu0
    %v2206 = vadd.f32 %v718, %v2205
    %v2207 = vpop.f32.mrf.mxu0
    %v2208 = vadd.f32 %v722, %v2207
    %v2209 = vpop.f32.mrf.mxu0
    %v2210 = vpop.f32.mrf.mxu0
    %2211 = vdwg.mxu0
    %2212 = vmatprep.subr.bf16.mxu0 %v1590
    %2213 = vmatpush1.bf16.msra.mxu0 %v1589
    %2214 = vmatprep.subr.bf16.mxu0 %v1586
    %2215 = vmatpush1.bf16.msra.mxu0 %v1585
    %2216 = vmatprep.subr.bf16.mxu0 %v1582
    %2217 = vmatpush1.bf16.msra.mxu0 %v1581
    %2218 = vmatprep.subr.bf16.mxu0 %v1578
    %2219 = vmatpush1.bf16.msra.mxu0 %v1577
    %2220 = vmatprep.subr.bf16.mxu0 %v1574
    %2221 = vmatpush1.bf16.msra.mxu0 %v1573
    %2222 = vmatprep.subr.bf16.mxu0 %v1570
    %2223 = vmatpush1.bf16.msra.mxu0 %v1569
    %2224 = vmatprep.subr.bf16.mxu0 %v1566
    %2225 = vmatpush1.bf16.msra.mxu0 %v1565
    %2226 = vmatprep.subr.bf16.mxu0 %v1562
    %2227 = vmatpush1.bf16.msra.mxu0 %v1561
    %2228 = vmatprep.subr.bf16.mxu0 %v1622
    %2229 = vmatpush2.bf16.msra.mxu0 %v1621
    %2230 = vmatprep.subr.bf16.mxu0 %v1618
    %2231 = vmatpush2.bf16.msra.mxu0 %v1617
    %2232 = vmatprep.subr.bf16.mxu0 %v1614
    %2233 = vmatpush2.bf16.msra.mxu0 %v1613
    %2234 = vmatprep.subr.bf16.mxu0 %v1610
    %2235 = vmatpush2.bf16.msra.mxu0 %v1609
    %2236 = vmatprep.subr.bf16.mxu0 %v1606
    %2237 = vmatpush2.bf16.msra.mxu0 %v1605
    %2238 = vmatprep.subr.bf16.mxu0 %v1602
    %2239 = vmatpush2.bf16.msra.mxu0 %v1601
    %2240 = vmatprep.subr.bf16.mxu0 %v1598
    %2241 = vmatpush2.bf16.msra.mxu0 %v1597
    %2242 = vmatprep.subr.bf16.mxu0 %v1594
    %2243 = vmatpush2.bf16.msra.mxu0 %v1593
    %2244 = vmatprep.mubr.bf16.mxu0 %v444
    %2245 = vmatmul.mubr.bf16.gmra.mxu0 %v443
    %v2246 = vpop.f32.mrf.mxu0
    %v2247 = vadd.f32 %v2206, %v2246
    %v2248 = vpop.f32.mrf.mxu0
    %v2249 = vadd.f32 %v2208, %v2248
    %v2250 = vpop.f32.mrf.mxu0
    %v2251 = vpop.f32.mrf.mxu0
    %2252 = vdwg.mxu0
    %2253 = vmatprep.subr.bf16.mxu0 %v1654
    %2254 = vmatpush1.bf16.msra.mxu0 %v1653
    %2255 = vmatprep.subr.bf16.mxu0 %v1650
    %2256 = vmatpush1.bf16.msra.mxu0 %v1649
    %2257 = vmatprep.subr.bf16.mxu0 %v1646
    %2258 = vmatpush1.bf16.msra.mxu0 %v1645
    %2259 = vmatprep.subr.bf16.mxu0 %v1642
    %2260 = vmatpush1.bf16.msra.mxu0 %v1641
    %2261 = vmatprep.subr.bf16.mxu0 %v1638
    %2262 = vmatpush1.bf16.msra.mxu0 %v1637
    %2263 = vmatprep.subr.bf16.mxu0 %v1634
    %2264 = vmatpush1.bf16.msra.mxu0 %v1633
    %2265 = vmatprep.subr.bf16.mxu0 %v1630
    %2266 = vmatpush1.bf16.msra.mxu0 %v1629
    %2267 = vmatprep.subr.bf16.mxu0 %v1626
    %2268 = vmatpush1.bf16.msra.mxu0 %v1625
    %2269 = vmatprep.subr.bf16.mxu0 %v1686
    %2270 = vmatpush2.bf16.msra.mxu0 %v1685
    %2271 = vmatprep.subr.bf16.mxu0 %v1682
    %2272 = vmatpush2.bf16.msra.mxu0 %v1681
    %2273 = vmatprep.subr.bf16.mxu0 %v1678
    %2274 = vmatpush2.bf16.msra.mxu0 %v1677
    %2275 = vmatprep.subr.bf16.mxu0 %v1674
    %2276 = vmatpush2.bf16.msra.mxu0 %v1673
    %2277 = vmatprep.subr.bf16.mxu0 %v1670
    %2278 = vmatpush2.bf16.msra.mxu0 %v1669
    %2279 = vmatprep.subr.bf16.mxu0 %v1666
    %2280 = vmatpush2.bf16.msra.mxu0 %v1665
    %2281 = vmatprep.subr.bf16.mxu0 %v1662
    %2282 = vmatpush2.bf16.msra.mxu0 %v1661
    %2283 = vmatprep.subr.bf16.mxu0 %v1658
    %2284 = vmatpush2.bf16.msra.mxu0 %v1657
    %2285 = vmatprep.mubr.bf16.mxu0 %v446
    %2286 = vmatmul.mubr.bf16.gmra.mxu0 %v445
    %v2287 = vpop.f32.mrf.mxu0
    %v2288 = vadd.f32 %v2247, %v2287
    %v2289 = vpop.f32.mrf.mxu0
    %v2290 = vadd.f32 %v2249, %v2289
    %v2291 = vpop.f32.mrf.mxu0
    %v2292 = vpop.f32.mrf.mxu0
    %2293 = vdwg.mxu0
    %2294 = vmatprep.subr.bf16.mxu0 %v1718
    %2295 = vmatpush1.bf16.msra.mxu0 %v1717
    %2296 = vmatprep.subr.bf16.mxu0 %v1714
    %2297 = vmatpush1.bf16.msra.mxu0 %v1713
    %2298 = vmatprep.subr.bf16.mxu0 %v1710
    %2299 = vmatpush1.bf16.msra.mxu0 %v1709
    %2300 = vmatprep.subr.bf16.mxu0 %v1706
    %2301 = vmatpush1.bf16.msra.mxu0 %v1705
    %2302 = vmatprep.subr.bf16.mxu0 %v1702
    %2303 = vmatpush1.bf16.msra.mxu0 %v1701
    %2304 = vmatprep.subr.bf16.mxu0 %v1698
    %2305 = vmatpush1.bf16.msra.mxu0 %v1697
    %2306 = vmatprep.subr.bf16.mxu0 %v1694
    %2307 = vmatpush1.bf16.msra.mxu0 %v1693
    %2308 = vmatprep.subr.bf16.mxu0 %v1690
    %2309 = vmatpush1.bf16.msra.mxu0 %v1689
    %2310 = vmatprep.subr.bf16.mxu0 %v1750
    %2311 = vmatpush2.bf16.msra.mxu0 %v1749
    %2312 = vmatprep.subr.bf16.mxu0 %v1746
    %2313 = vmatpush2.bf16.msra.mxu0 %v1745
    %2314 = vmatprep.subr.bf16.mxu0 %v1742
    %2315 = vmatpush2.bf16.msra.mxu0 %v1741
    %2316 = vmatprep.subr.bf16.mxu0 %v1738
    %2317 = vmatpush2.bf16.msra.mxu0 %v1737
    %2318 = vmatprep.subr.bf16.mxu0 %v1734
    %2319 = vmatpush2.bf16.msra.mxu0 %v1733
    %2320 = vmatprep.subr.bf16.mxu0 %v1730
    %2321 = vmatpush2.bf16.msra.mxu0 %v1729
    %2322 = vmatprep.subr.bf16.mxu0 %v1726
    %2323 = vmatpush2.bf16.msra.mxu0 %v1725
    %2324 = vmatprep.subr.bf16.mxu0 %v1722
    %2325 = vmatpush2.bf16.msra.mxu0 %v1721
    %2326 = vmatprep.mubr.bf16.mxu0 %v448
    %2327 = vmatmul.mubr.bf16.gmra.mxu0 %v447
    %v2328 = vpop.f32.mrf.mxu0
    %v2329 = vadd.f32 %v2288, %v2328
    %v2330 = vpop.f32.mrf.mxu0
    %v2331 = vadd.f32 %v2290, %v2330
    %v2332 = vpop.f32.mrf.mxu0
    %v2333 = vpop.f32.mrf.mxu0
    %2334 = vdwg.mxu0
    %vm2335 = vcmp.ge.f32.partialorder %v2165, 0.0
    %vm2336 = vcmp.ge.f32.partialorder %v2167, 0.0
    %vm2337 = vcmp.ge.f32.partialorder %v2329, 0.0
    %vm2338 = vcmp.ge.f32.partialorder %v2331, 0.0
    %s2339 = sld [smem:[#allocation12 + $0x1]]
    %v2340 = vstv %s2339
    %v2341 = vmul.f32 %v2340, %v2165
    %v2342 = vmul.f32 %v2340, %v2167
    %v2343 = vmul.f32 %v2340, %v2329
    %v2344 = vmul.f32 %v2340, %v2331
    %v2345 = vsel %vm2335, %v2165, %v2341
    %v2346 = vsel %vm2336, %v2167, %v2342
    %v2347 = vsel %vm2337, %v2329, %v2343
    %v2348 = vsel %vm2338, %v2331, %v2344
    %v2349 = vpack.c.bf16 %v2345, %v2345
    %v2350 = vpack.c.bf16 %v2346, %v2346
    %v2351 = vpack.c.bf16 %v2347, %v2347
    %v2352 = vpack.c.bf16 %v2348, %v2348
    %v2353 = vld [vmem:[#allocation11] sm:$0xf]
    %v2354 = vld [vmem:[#allocation11 + $0x4] sm:$0xf]
    %v2355 = vld [vmem:[#allocation11 + $0x8] sm:$0xf]
    %v2356 = vld [vmem:[#allocation11 + $0xc] sm:$0xf]
    %v2357 = vld [vmem:[#allocation11 + $0x10] sm:$0xf]
    %v2358 = vld [vmem:[#allocation11 + $0x14] sm:$0xf]
    %v2359 = vld [vmem:[#allocation11 + $0x18] sm:$0xf]
    %v2360 = vld [vmem:[#allocation11 + $0x1c] sm:$0xf]
    %v2361 = vld [vmem:[#allocation11 + $0x20] sm:$0xf]
    %v2362 = vld [vmem:[#allocation11 + $0x24] sm:$0xf]
    %v2363 = vld [vmem:[#allocation11 + $0x28] sm:$0xf]
    %v2364 = vld [vmem:[#allocation11 + $0x2c] sm:$0xf]
    %v2365 = vld [vmem:[#allocation11 + $0x30] sm:$0xf]
    %v2366 = vld [vmem:[#allocation11 + $0x34] sm:$0xf]
    %v2367 = vld [vmem:[#allocation11 + $0x38] sm:$0xf]
    %v2368 = vld [vmem:[#allocation11 + $0x3c] sm:$0xf]
    %v2369 = vld [vmem:[#allocation11 + $0x40] sm:$0xf]
    %v2370 = vld [vmem:[#allocation11 + $0x44] sm:$0xf]
    %v2371 = vld [vmem:[#allocation11 + $0x48] sm:$0xf]
    %v2372 = vld [vmem:[#allocation11 + $0x4c] sm:$0xf]
    %v2373 = vld [vmem:[#allocation11 + $0x50] sm:$0xf]
    %v2374 = vld [vmem:[#allocation11 + $0x54] sm:$0xf]
    %v2375 = vld [vmem:[#allocation11 + $0x58] sm:$0xf]
    %v2376 = vld [vmem:[#allocation11 + $0x5c] sm:$0xf]
    %v2377 = vld [vmem:[#allocation11 + $0x60] sm:$0xf]
    %v2378 = vld [vmem:[#allocation11 + $0x64] sm:$0xf]
    %v2379 = vld [vmem:[#allocation11 + $0x68] sm:$0xf]
    %v2380 = vld [vmem:[#allocation11 + $0x6c] sm:$0xf]
    %v2381 = vld [vmem:[#allocation11 + $0x70] sm:$0xf]
    %v2382 = vld [vmem:[#allocation11 + $0x74] sm:$0xf]
    %v2383 = vld [vmem:[#allocation11 + $0x78] sm:$0xf]
    %v2384 = vld [vmem:[#allocation11 + $0x7c] sm:$0xf]
    %v2385 = vld [vmem:[#allocation11 + $0x80] sm:$0xf]
    %v2386 = vld [vmem:[#allocation11 + $0x84] sm:$0xf]
    %v2387 = vld [vmem:[#allocation11 + $0x88] sm:$0xf]
    %v2388 = vld [vmem:[#allocation11 + $0x8c] sm:$0xf]
    %v2389 = vld [vmem:[#allocation11 + $0x90] sm:$0xf]
    %v2390 = vld [vmem:[#allocation11 + $0x94] sm:$0xf]
    %v2391 = vld [vmem:[#allocation11 + $0x98] sm:$0xf]
    %v2392 = vld [vmem:[#allocation11 + $0x9c] sm:$0xf]
    %v2393 = vld [vmem:[#allocation11 + $0xa0] sm:$0xf]
    %v2394 = vld [vmem:[#allocation11 + $0xa4] sm:$0xf]
    %v2395 = vld [vmem:[#allocation11 + $0xa8] sm:$0xf]
    %v2396 = vld [vmem:[#allocation11 + $0xac] sm:$0xf]
    %v2397 = vld [vmem:[#allocation11 + $0xb0] sm:$0xf]
    %v2398 = vld [vmem:[#allocation11 + $0xb4] sm:$0xf]
    %v2399 = vld [vmem:[#allocation11 + $0xb8] sm:$0xf]
    %v2400 = vld [vmem:[#allocation11 + $0xbc] sm:$0xf]
    %v2401 = vld [vmem:[#allocation11 + $0xc0] sm:$0xf]
    %v2402 = vld [vmem:[#allocation11 + $0xc4] sm:$0xf]
    %v2403 = vld [vmem:[#allocation11 + $0xc8] sm:$0xf]
    %v2404 = vld [vmem:[#allocation11 + $0xcc] sm:$0xf]
    %v2405 = vld [vmem:[#allocation11 + $0xd0] sm:$0xf]
    %v2406 = vld [vmem:[#allocation11 + $0xd4] sm:$0xf]
    %v2407 = vld [vmem:[#allocation11 + $0xd8] sm:$0xf]
    %v2408 = vld [vmem:[#allocation11 + $0xdc] sm:$0xf]
    %v2409 = vld [vmem:[#allocation11 + $0xe0] sm:$0xf]
    %v2410 = vld [vmem:[#allocation11 + $0xe4] sm:$0xf]
    %v2411 = vld [vmem:[#allocation11 + $0xe8] sm:$0xf]
    %v2412 = vld [vmem:[#allocation11 + $0xec] sm:$0xf]
    %v2413 = vld [vmem:[#allocation11 + $0xf0] sm:$0xf]
    %v2414 = vld [vmem:[#allocation11 + $0xf4] sm:$0xf]
    %v2415 = vld [vmem:[#allocation11 + $0xf8] sm:$0xf]
    %v2416 = vld [vmem:[#allocation11 + $0xfc] sm:$0xf]
    %v2417 = vld [vmem:[%s6] sm:$0x1]
    %v2419 = vlaneseq
    %v2420 = vshrl.u32 %v2419, 7
    %v2421 = vsub.s32 0, %v2420
    %v2422 = vrot.slane %v2417, %v2421
    %v2488 = vunpack.c.l.b16 %v2353
    %v2489 = vunpack.c.l.b16 %v2354
    %v2490 = vunpack.c.l.b16 %v2355
    %v2491 = vunpack.c.l.b16 %v2356
    %v2492 = vunpack.c.l.b16 %v2357
    %v2493 = vunpack.c.l.b16 %v2358
    %v2494 = vunpack.c.l.b16 %v2359
    %v2495 = vunpack.c.l.b16 %v2360
    %v2496 = vunpack.c.l.b16 %v2361
    %v2497 = vunpack.c.l.b16 %v2362
    %v2498 = vunpack.c.l.b16 %v2363
    %v2499 = vunpack.c.l.b16 %v2364
    %v2500 = vunpack.c.l.b16 %v2365
    %v2501 = vunpack.c.l.b16 %v2366
    %v2502 = vunpack.c.l.b16 %v2367
    %v2503 = vunpack.c.l.b16 %v2368
    %v2504 = vunpack.c.l.b16 %v2369
    %v2505 = vunpack.c.l.b16 %v2370
    %v2506 = vunpack.c.l.b16 %v2371
    %v2507 = vunpack.c.l.b16 %v2372
    %v2508 = vunpack.c.l.b16 %v2373
    %v2509 = vunpack.c.l.b16 %v2374
    %v2510 = vunpack.c.l.b16 %v2375
    %v2511 = vunpack.c.l.b16 %v2376
    %v2512 = vunpack.c.l.b16 %v2377
    %v2513 = vunpack.c.l.b16 %v2378
    %v2514 = vunpack.c.l.b16 %v2379
    %v2515 = vunpack.c.l.b16 %v2380
    %v2516 = vunpack.c.l.b16 %v2381
    %v2517 = vunpack.c.l.b16 %v2382
    %v2518 = vunpack.c.l.b16 %v2383
    %v2519 = vunpack.c.l.b16 %v2384
    %v2520 = vunpack.c.l.b16 %v2385
    %v2521 = vunpack.c.l.b16 %v2386
    %v2522 = vunpack.c.l.b16 %v2387
    %v2523 = vunpack.c.l.b16 %v2388
    %v2524 = vunpack.c.l.b16 %v2389
    %v2525 = vunpack.c.l.b16 %v2390
    %v2526 = vunpack.c.l.b16 %v2391
    %v2527 = vunpack.c.l.b16 %v2392
    %v2528 = vunpack.c.l.b16 %v2393
    %v2529 = vunpack.c.l.b16 %v2394
    %v2530 = vunpack.c.l.b16 %v2395
    %v2531 = vunpack.c.l.b16 %v2396
    %v2532 = vunpack.c.l.b16 %v2397
    %v2533 = vunpack.c.l.b16 %v2398
    %v2534 = vunpack.c.l.b16 %v2399
    %v2535 = vunpack.c.l.b16 %v2400
    %v2536 = vunpack.c.l.b16 %v2401
    %v2537 = vunpack.c.l.b16 %v2402
    %v2538 = vunpack.c.l.b16 %v2403
    %v2539 = vunpack.c.l.b16 %v2404
    %v2540 = vunpack.c.l.b16 %v2405
    %v2541 = vunpack.c.l.b16 %v2406
    %v2542 = vunpack.c.l.b16 %v2407
    %v2543 = vunpack.c.l.b16 %v2408
    %v2544 = vunpack.c.l.b16 %v2409
    %v2545 = vunpack.c.l.b16 %v2410
    %v2546 = vunpack.c.l.b16 %v2411
    %v2547 = vunpack.c.l.b16 %v2412
    %v2548 = vunpack.c.l.b16 %v2413
    %v2549 = vunpack.c.l.b16 %v2414
    %v2550 = vunpack.c.l.b16 %v2415
    %v2551 = vunpack.c.l.b16 %v2416
    %v2552 = vpack.c.b16 %v2489, %v2488
    %v2553 = vpack.c.b16 %v2491, %v2490
    %v2554 = vpack.c.b16 %v2493, %v2492
    %v2555 = vpack.c.b16 %v2495, %v2494
    %v2556 = vpack.c.b16 %v2497, %v2496
    %v2557 = vpack.c.b16 %v2499, %v2498
    %v2558 = vpack.c.b16 %v2501, %v2500
    %v2559 = vpack.c.b16 %v2503, %v2502
    %v2560 = vpack.c.b16 %v2505, %v2504
    %v2561 = vpack.c.b16 %v2507, %v2506
    %v2562 = vpack.c.b16 %v2509, %v2508
    %v2563 = vpack.c.b16 %v2511, %v2510
    %v2564 = vpack.c.b16 %v2513, %v2512
    %v2565 = vpack.c.b16 %v2515, %v2514
    %v2566 = vpack.c.b16 %v2517, %v2516
    %v2567 = vpack.c.b16 %v2519, %v2518
    %v2568 = vpack.c.b16 %v2521, %v2520
    %v2569 = vpack.c.b16 %v2523, %v2522
    %v2570 = vpack.c.b16 %v2525, %v2524
    %v2571 = vpack.c.b16 %v2527, %v2526
    %v2572 = vpack.c.b16 %v2529, %v2528
    %v2573 = vpack.c.b16 %v2531, %v2530
    %v2574 = vpack.c.b16 %v2533, %v2532
    %v2575 = vpack.c.b16 %v2535, %v2534
    %v2576 = vpack.c.b16 %v2537, %v2536
    %v2577 = vpack.c.b16 %v2539, %v2538
    %v2578 = vpack.c.b16 %v2541, %v2540
    %v2579 = vpack.c.b16 %v2543, %v2542
    %v2580 = vpack.c.b16 %v2545, %v2544
    %v2581 = vpack.c.b16 %v2547, %v2546
    %v2582 = vpack.c.b16 %v2549, %v2548
    %v2583 = vpack.c.b16 %v2551, %v2550
    %2616 = vmatprep.subr.bf16.mxu0 0
    %2617 = vmatpush1.bf16.msra.mxu0 %v2559
    %2618 = vmatprep.subr.bf16.mxu0 0
    %2619 = vmatpush1.bf16.msra.mxu0 %v2558
    %2620 = vmatprep.subr.bf16.mxu0 0
    %2621 = vmatpush1.bf16.msra.mxu0 %v2557
    %2622 = vmatprep.subr.bf16.mxu0 0
    %2623 = vmatpush1.bf16.msra.mxu0 %v2556
    %2624 = vmatprep.subr.bf16.mxu0 0
    %2625 = vmatpush1.bf16.msra.mxu0 %v2555
    %2626 = vmatprep.subr.bf16.mxu0 0
    %2627 = vmatpush1.bf16.msra.mxu0 %v2554
    %2628 = vmatprep.subr.bf16.mxu0 0
    %2629 = vmatpush1.bf16.msra.mxu0 %v2553
    %2630 = vmatprep.subr.bf16.mxu0 0
    %2631 = vmatpush1.bf16.msra.mxu0 %v2552
    %2632 = vmatprep.subr.bf16.mxu0 0
    %2633 = vmatpush2.bf16.msra.mxu0 %v2567
    %2634 = vmatprep.subr.bf16.mxu0 0
    %2635 = vmatpush2.bf16.msra.mxu0 %v2566
    %2636 = vmatprep.subr.bf16.mxu0 0
    %2637 = vmatpush2.bf16.msra.mxu0 %v2565
    %2638 = vmatprep.subr.bf16.mxu0 0
    %2639 = vmatpush2.bf16.msra.mxu0 %v2564
    %2640 = vmatprep.subr.bf16.mxu0 0
    %2641 = vmatpush2.bf16.msra.mxu0 %v2563
    %2642 = vmatprep.subr.bf16.mxu0 0
    %2643 = vmatpush2.bf16.msra.mxu0 %v2562
    %2644 = vmatprep.subr.bf16.mxu0 0
    %2645 = vmatpush2.bf16.msra.mxu0 %v2561
    %2646 = vmatprep.subr.bf16.mxu0 0
    %2647 = vmatpush2.bf16.msra.mxu0 %v2560
    %2648 = vmatprep.mubr.bf16.mxu0 %v2350
    %2649 = vmatmul.mubr.bf16.gmra.mxu0 %v2349
    %v2650 = vpop.f32.mrf.mxu0
    %v2651 = vadd.f32 %v2422, %v2650
    %v2652 = vpop.f32.mrf.mxu0
    %v2653 = vpop.f32.mrf.mxu0
    %v2654 = vpop.f32.mrf.mxu0
    %2655 = vdwg.mxu0
    %2656 = vmatprep.subr.bf16.mxu0 0
    %2657 = vmatpush1.bf16.msra.mxu0 %v2575
    %2658 = vmatprep.subr.bf16.mxu0 0
    %2659 = vmatpush1.bf16.msra.mxu0 %v2574
    %2660 = vmatprep.subr.bf16.mxu0 0
    %2661 = vmatpush1.bf16.msra.mxu0 %v2573
    %2662 = vmatprep.subr.bf16.mxu0 0
    %2663 = vmatpush1.bf16.msra.mxu0 %v2572
    %2664 = vmatprep.subr.bf16.mxu0 0
    %2665 = vmatpush1.bf16.msra.mxu0 %v2571
    %2666 = vmatprep.subr.bf16.mxu0 0
    %2667 = vmatpush1.bf16.msra.mxu0 %v2570
    %2668 = vmatprep.subr.bf16.mxu0 0
    %2669 = vmatpush1.bf16.msra.mxu0 %v2569
    %2670 = vmatprep.subr.bf16.mxu0 0
    %2671 = vmatpush1.bf16.msra.mxu0 %v2568
    %2672 = vmatprep.subr.bf16.mxu0 0
    %2673 = vmatpush2.bf16.msra.mxu0 %v2583
    %2674 = vmatprep.subr.bf16.mxu0 0
    %2675 = vmatpush2.bf16.msra.mxu0 %v2582
    %2676 = vmatprep.subr.bf16.mxu0 0
    %2677 = vmatpush2.bf16.msra.mxu0 %v2581
    %2678 = vmatprep.subr.bf16.mxu0 0
    %2679 = vmatpush2.bf16.msra.mxu0 %v2580
    %2680 = vmatprep.subr.bf16.mxu0 0
    %2681 = vmatpush2.bf16.msra.mxu0 %v2579
    %2682 = vmatprep.subr.bf16.mxu0 0
    %2683 = vmatpush2.bf16.msra.mxu0 %v2578
    %2684 = vmatprep.subr.bf16.mxu0 0
    %2685 = vmatpush2.bf16.msra.mxu0 %v2577
    %2686 = vmatprep.subr.bf16.mxu0 0
    %2687 = vmatpush2.bf16.msra.mxu0 %v2576
    %2688 = vmatprep.mubr.bf16.mxu0 %v2352
    %2689 = vmatmul.mubr.bf16.gmra.mxu0 %v2351
    %v2690 = vpop.f32.mrf.mxu0
    %v2691 = vadd.f32 %v2651, %v2690
    %v2692 = vpop.f32.mrf.mxu0
    %v2693 = vpop.f32.mrf.mxu0
    %v2694 = vpop.f32.mrf.mxu0
    %2695 = vdwg.mxu0
    %v2696 = vxor.u32 %v2691, 2147483648
    %v2697 = vmul.f32 %v2696, 1.442695
    %v2698 = vpow.pop %v2697
    %v2699 = vadd.f32 %v2698, 1.0
    %v2700 = vrcp.pop %v2699
    %v2701 = vmul.f32 1.0, %v2700
    %2702 = vst [vmem:[#allocation13] sm:$0xff] %v2701
    // Predicated region
    $region58: #{tpu_custom_call.1} parent=1 // pred_check
      _
    $region59: #{tpu_custom_call.1} parent=1 // pred_check_branch
      %2704 = sbr.rel (0) target = $region61
    $region60: #{tpu_custom_call.1} parent=1 // pred_region
      %s2706 = ssub.s32 128, 128
      %2707 = vsyncadd [#allocation4], %s2706
      %s2709 = sshll.u32 [#allocation13], 4
      %s2710 = int_to_ptr.vmem [resolvable:$true] %s2709
      %2712 = dma.vmem_to_hbm [thread:$0]  %s2710, 128, %s8, [#allocation4]
    $region61: #{tpu_custom_call.1} parent=1 // pred_fallthru
      _
    // Predicated region
    $region62: #{tpu_custom_call.1} parent=1 // pred_check
      _
    $region63: #{tpu_custom_call.1} parent=1 // pred_check_branch
      %2714 = sbr.rel (0) target = $region65
    $region64: #{tpu_custom_call.1} parent=1 // pred_region
      %2715 = dma.done [#allocation4], 128
    $region65: #{tpu_custom_call.1} parent=1 // pred_fallthru
      _
    %2716 = vsyncpa [#allocation3], 1
    %2717 = vsyncpa [#allocation7], 1
    %2718 = vsyncpa [#allocation10], 1
    %2719 = vsyncpa [#allocation4], 1
    %2720 = vsyncpa [#allocation5], 1

</llo_original>
